<compile_context>
chip_gen: v7x
topology: tpu7x:2x2x1
jax: 0.10.0
libtpu: 0.0.40
codegen_flags: <defaults>
</compile_context>

<pallas_src>
import jax
import jax.numpy as jnp
from jax.experimental import pallas as pl
from jax.experimental.pallas import tpu as pltpu


def _round_up(x, m):
    return ((x + m - 1) // m) * m


def _vmem_bytes(T, B_core, E, H_pad, C_pad):
    """Approximate VMEM footprint of one kernel instance (bytes)."""
    G4 = 4 * H_pad
    # Single-buffered bf16 weights + f32 biases + f32 h/c carries (T-independent).
    fixed = (E * G4 + H_pad * G4 + H_pad * C_pad) * 2 + (G4 + C_pad) * 4
    fixed += 2 * B_core * H_pad * 4
    # Per-time-step bytes: double-buffered x (bf16) / out (f32) blocks
    # plus the xw and h-history f32 slabs.
    per_t = B_core * (2 * E * 2 + 2 * C_pad * 4 + G4 * 4 + H_pad * 4)
    return fixed + T * per_t


def _pick_time_block(S, B_core, E, H_pad, C_pad, budget_bytes):
    """Largest multiple-of-8 time block (<=128) whose VMEM footprint fits budget."""
    cap = min(128, _round_up(S, 8))
    best = 8
    t = 8
    while t <= cap:
        if _vmem_bytes(t, B_core, E, H_pad, C_pad) <= budget_bytes:
            best = t
        t += 8
    return best


def _pad_gate_cols(w, H, H_pad):
    """Pad the 4*H gate axis (PyTorch order i,f,g,o) so each gate occupies its
    own 128-lane-aligned H_pad slot.  Padded columns are zero."""
    lead = w.shape[:-1]
    w4 = w.reshape(*lead, 4, H)
    w4 = jnp.pad(w4, [(0, 0)] * len(lead) + [(0, 0), (0, H_pad - H)])
    return w4.reshape(*lead, 4 * H_pad)


def lstm_block_kernel(x_ref, wih_ref, whh_ref, b_ref, wout_ref, bout_ref,
                      out_ref, h_scr, c_scr, xw_scr, hseq_scr):
    """One grid step == T LSTM time steps (+ bulk output projection)."""
    T, B_core, E = x_ref.shape
    H_pad = h_scr.shape[-1]
    C_pad = out_ref.shape[-1]
    G4 = 4 * H_pad

    # Reset the carries at the start of each batch block's time sweep.
    @pl.when(pl.program_id(1) == 0)
    def _init():
        h_scr[...] = jnp.zeros_like(h_scr)
        c_scr[...] = jnp.zeros_like(c_scr)

    # ---- Bulk input projection for all T steps: one big bf16 MXU matmul. ----
    # Bias is folded in here so it is broadcast once per block, not per step.
    x_flat = x_ref[...].reshape(T * B_core, E)
    xw = jnp.dot(x_flat, wih_ref[...], preferred_element_type=jnp.float32)
    xw_scr[...] = (xw + b_ref[...]).reshape(T, B_core, G4)

    w_hh = whh_ref[...]

    def _sigmoid(v):
        # Single native EUP tanh instead of exp + divide on the serial chain.
        return 0.5 * jnp.tanh(0.5 * v) + 0.5

    # ---- Sequential recurrence over the T steps of this block (time-major). ----
    def step(i, carry):
        h, c = carry
        # gates = (x_t @ W_ih + b)  +  h @ W_hh          -> [B_core, 4*H_pad]
        gates = xw_scr[i] + jnp.dot(h.astype(jnp.bfloat16), w_hh,
                                    preferred_element_type=jnp.float32)
        # Gate slices are 128-lane aligned (H_pad == 128k). PyTorch order i,f,g,o.
        i_g = _sigmoid(gates[:, 0 * H_pad:1 * H_pad])
        f_g = _sigmoid(gates[:, 1 * H_pad:2 * H_pad])
        g_g = jnp.tanh(gates[:, 2 * H_pad:3 * H_pad])
        o_g = _sigmoid(gates[:, 3 * H_pad:4 * H_pad])
        c_new = f_g * c + i_g * g_g
        h_new = o_g * jnp.tanh(c_new)
        hseq_scr[i] = h_new
        return h_new, c_new

    # Cap the unroll when the per-step vreg footprint gets large (gates is
    # B_core x 4*H_pad f32) to avoid spills on the serial recurrence path.
    unroll = True if H_pad <= 512 else 8
    h_fin, c_fin = jax.lax.fori_loop(0, T, step, (h_scr[...], c_scr[...]),
                                     unroll=unroll)
    h_scr[...] = h_fin
    c_scr[...] = c_fin

    # ---- Classifier head over the whole block: one matmul, one lane-dense store.
    h_all = hseq_scr[...].reshape(T * B_core, H_pad).astype(jnp.bfloat16)
    logits = jnp.dot(h_all, wout_ref[...], preferred_element_type=jnp.float32)
    out_ref[...] = (logits + bout_ref[...]).reshape(T, B_core, C_pad)


def tashkeel_rnn_forward(tokens, params, *, time_block=None,
                         vmem_budget_bytes=28 << 20):
    """tokens: [B, S] int32 -> logits [B, S, C]."""
    emb_table = params["embedding"]          # [V, E]
    w_ih = params["w_ih"]                    # [E, 4H]
    w_hh = params["w_hh"]                    # [H, 4H]
    b = params["b"]                          # [1, 4H]   (b_ih + b_hh combined)
    w_out = params["w_out"]                  # [H, C]
    b_out = params["b_out"]                  # [1, C]

    B, S = tokens.shape
    E = emb_table.shape[1]
    H = w_hh.shape[0]
    C = w_out.shape[1]

    # ---- Hardware-friendly padded sizes. ----
    B_pad = _round_up(B, 8)                  # >= 8 sublanes (f32 tile)
    H_pad = _round_up(H, 128)                # 128-lane aligned per-gate width
    C_pad = _round_up(C, 128)                # lane-dense output stores
    G4 = 4 * H_pad

    # Split the (independent) batch rows across two cores when big enough (v7x).
    B_core = B_pad // 2 if (B_pad % 16 == 0) else B_pad
    B_blocks = B_pad // B_core

    T = time_block if time_block is not None else _pick_time_block(
        S, B_core, E, H_pad, C_pad, vmem_budget_bytes)
    S_pad = _round_up(S, T)

    # ---- Pad parameters (zero padding => padded H/C lanes stay exactly zero)
    # and store the matmul weights in bf16 (MXU-native input type).
    w_ih_p = _pad_gate_cols(w_ih, H, H_pad).astype(jnp.bfloat16)   # [E, 4*H_pad]
    w_hh_p = jnp.pad(_pad_gate_cols(w_hh, H, H_pad),
                     ((0, H_pad - H), (0, 0))).astype(jnp.bfloat16)  # [H_pad, 4*H_pad]
    b_p = _pad_gate_cols(b, H, H_pad).astype(jnp.float32)          # [1, 4*H_pad]
    w_out_p = jnp.pad(w_out, ((0, H_pad - H), (0, C_pad - C))
                      ).astype(jnp.bfloat16)                        # [H_pad, C_pad]
    b_out_p = jnp.pad(b_out, ((0, 0), (0, C_pad - C))
                      ).astype(jnp.float32)                         # [1, C_pad]

    # Embedding lookup (gather) is glue; done in plain JAX.  Inputs are fed
    # time-major so the per-step slabs inside the kernel are contiguous.
    # Padded batch rows / time steps are independent and sliced off afterwards.
    embeddings = jnp.take(emb_table, tokens, axis=0)               # [B, S, E]
    x = jnp.transpose(embeddings, (1, 0, 2))                       # [S, B, E]
    x = jnp.pad(x, ((0, S_pad - S), (0, B_pad - B), (0, 0)))       # [S_pad, B_pad, E]
    x = x.astype(jnp.bfloat16)

    # Explicit scoped-VMEM limit (v5e default is 16 MiB; keep under v7x's 64 MiB).
    needed = _vmem_bytes(T, B_core, E, H_pad, C_pad)
    vmem_limit = int(min(max(needed + (4 << 20), 16 << 20), 64 << 20))

    # Loop-invariant operands: constant index_map + single-buffered VMEM copy.
    def _weight_spec(shape):
        return pl.BlockSpec(shape, lambda bb, t: (0,) * len(shape),
                            pipeline_mode=pl.Buffered(1))

    out = pl.pallas_call(
        lstm_block_kernel,
        out_shape=jax.ShapeDtypeStruct((S_pad, B_pad, C_pad), jnp.float32),
        grid_spec=pltpu.PrefetchScalarGridSpec(
            num_scalar_prefetch=0,
            grid=(B_blocks, S_pad // T),
            in_specs=[
                pl.BlockSpec((T, B_core, E), lambda bb, t: (t, bb, 0)),  # x block
                _weight_spec((E, G4)),                                   # W_ih (padded)
                _weight_spec((H_pad, G4)),                               # W_hh (padded)
                _weight_spec((1, G4)),                                   # b    (padded)
                _weight_spec((H_pad, C_pad)),                            # W_out(padded)
                _weight_spec((1, C_pad)),                                # b_out(padded)
            ],
            out_specs=pl.BlockSpec((T, B_core, C_pad), lambda bb, t: (t, bb, 0)),
            scratch_shapes=[
                pltpu.VMEM((B_core, H_pad), jnp.float32),                # h carry
                pltpu.VMEM((B_core, H_pad), jnp.float32),                # c carry
                pltpu.VMEM((T, B_core, G4), jnp.float32),                # x@W_ih + b slab
                pltpu.VMEM((T, B_core, H_pad), jnp.float32),             # h_t history
            ],
        ),
        compiler_params=pltpu.CompilerParams(
            dimension_semantics=("parallel", "arbitrary"),   # batch || , time serial
            vmem_limit_bytes=vmem_limit,
        ),
    )(x, w_ih_p, w_hh_p, b_p, w_out_p, b_out_p)

    # Back to [B, S, C]; single cheap transpose in plain JAX.
    return jnp.transpose(out[:S, :B, :C], (1, 0, 2))


def reference_forward(tokens, params):
    """Pure-JAX f32 reference (same math) for a correctness check."""
    emb = jnp.take(params["embedding"], tokens, axis=0)            # [B, S, E]
    B, S, E = emb.shape
    H = params["w_hh"].shape[0]

    def step(carry, x_t):
        h, c = carry
        gates = x_t @ params["w_ih"] + h @ params["w_hh"] + params["b"]
        i_g = jax.nn.sigmoid(gates[:, 0 * H:1 * H])
        f_g = jax.nn.sigmoid(gates[:, 1 * H:2 * H])
        g_g = jnp.tanh(gates[:, 2 * H:3 * H])
        o_g = jax.nn.sigmoid(gates[:, 3 * H:4 * H])
        c = f_g * c + i_g * g_g
        h = o_g * jnp.tanh(c)
        logits = h @ params["w_out"] + params["b_out"]
        return (h, c), logits

    x_seq = jnp.transpose(emb, (1, 0, 2))
    h0 = jnp.zeros((B, H), jnp.float32)
    c0 = jnp.zeros((B, H), jnp.float32)
    _, logits = jax.lax.scan(step, (h0, c0), x_seq)                # [S, B, C]
    return jnp.transpose(logits, (1, 0, 2))


def init_params(key, vocab_size, embedding_size, hidden_size, n_classes):
    ks = jax.random.split(key, 6)
    scale = 0.1
    return {
        "embedding": scale * jax.random.normal(ks[0], (vocab_size, embedding_size), jnp.float32),
        "w_ih":      scale * jax.random.normal(ks[1], (embedding_size, 4 * hidden_size), jnp.float32),
        "w_hh":      scale * jax.random.normal(ks[2], (hidden_size, 4 * hidden_size), jnp.float32),
        "b":         scale * jax.random.normal(ks[3], (1, 4 * hidden_size), jnp.float32),
        "w_out":     scale * jax.random.normal(ks[4], (hidden_size, n_classes), jnp.float32),
        "b_out":     scale * jax.random.normal(ks[5], (1, n_classes), jnp.float32),
    }


if __name__ == "__main__":
    # Small deterministic config: batch=2, seq=8, vocab=40, embedding=32, hidden=32, classes=16
    B, S = 2, 8
    VOCAB, EMB, HID, NCLS = 40, 32, 32, 16

    key = jax.random.PRNGKey(0)
    k_tok, k_par = jax.random.split(key)
    tokens = jax.random.randint(k_tok, (B, S), 0, VOCAB, dtype=jnp.int32)
    params = init_params(k_par, VOCAB, EMB, HID, NCLS)

    logits = tashkeel_rnn_forward(tokens, params)
    logits = jax.block_until_ready(logits)

    ref = reference_forward(tokens, params)
    assert logits.shape == (B, S, NCLS)
    # bf16 matmul inputs (f32 accumulation) => relaxed tolerance vs. f32 reference.
    assert jnp.allclose(logits, ref, atol=2e-2, rtol=2e-2)

    print("KERNEL_OK")
</pallas_src>

<mosaic_0001>
module attributes {stable_mosaic.version = 11 : i64} {
  func.func @lstm_block_kernel(%arg0: i32, %arg1: i32, %arg2: memref<8x8x32xbf16, #tpu.memory_space<vmem>>, %arg3: memref<32x512xbf16, #tpu.memory_space<vmem>>, %arg4: memref<128x512xbf16, #tpu.memory_space<vmem>>, %arg5: memref<1x512xf32, #tpu.memory_space<vmem>>, %arg6: memref<128x128xbf16, #tpu.memory_space<vmem>>, %arg7: memref<1x128xf32, #tpu.memory_space<vmem>>, %arg8: memref<8x8x128xf32, #tpu.memory_space<vmem>>, %arg9: memref<8x128xf32, #tpu.memory_space<vmem>>, %arg10: memref<8x128xf32, #tpu.memory_space<vmem>>, %arg11: memref<8x8x512xf32, #tpu.memory_space<vmem>>, %arg12: memref<8x8x128xf32, #tpu.memory_space<vmem>>) attributes {dimension_semantics = [#tpu.dimension_semantics<parallel>, #tpu.dimension_semantics<arbitrary>], iteration_bounds = array<i64: 1, 1>, scalar_prefetch = 0 : i64, scratch_operands = 4 : i64, tpu.core_type = #tpu.core_type<tc>, window_params = [{transform_indices = @transform_0, window_bounds = array<i64: 8, 8, 32>}, {pipeline_mode = #tpu.pipeline_mode<synchronous>, transform_indices = @transform_1, window_bounds = array<i64: 32, 512>}, {pipeline_mode = #tpu.pipeline_mode<synchronous>, transform_indices = @transform_2, window_bounds = array<i64: 128, 512>}, {pipeline_mode = #tpu.pipeline_mode<synchronous>, transform_indices = @transform_3, window_bounds = array<i64: 1, 512>}, {pipeline_mode = #tpu.pipeline_mode<synchronous>, transform_indices = @transform_4, window_bounds = array<i64: 128, 128>}, {pipeline_mode = #tpu.pipeline_mode<synchronous>, transform_indices = @transform_5, window_bounds = array<i64: 1, 128>}, {transform_indices = @transform_6, window_bounds = array<i64: 8, 8, 128>}]} {
    %c0_i32 = arith.constant 0 : i32
    %0 = arith.cmpi eq, %arg1, %c0_i32 : i32
    %1 = arith.extui %0 : i1 to i32
    %c0_i32_0 = arith.constant 0 : i32
    %2 = arith.cmpi ne, %1, %c0_i32_0 : i32
    scf.if %2 {
      %cst_144 = arith.constant 0.000000e+00 : f32
      %355 = vector.broadcast %cst_144 : f32 to vector<8x128xf32>
      %c0_145 = arith.constant 0 : index
      %c0_146 = arith.constant 0 : index
      %356 = vector.load %arg9[%c0_145, %c0_146] : memref<8x128xf32, #tpu.memory_space<vmem>>, vector<8x128xf32>
      tpu.vector_store %arg9[%c0_145, %c0_146], %355 {strides = array<i32>} : memref<8x128xf32, #tpu.memory_space<vmem>>, vector<8x128xf32>,
      %cst_147 = arith.constant 0.000000e+00 : f32
      %357 = vector.broadcast %cst_147 : f32 to vector<8x128xf32>
      %c0_148 = arith.constant 0 : index
      %c0_149 = arith.constant 0 : index
      %358 = vector.load %arg10[%c0_148, %c0_149] : memref<8x128xf32, #tpu.memory_space<vmem>>, vector<8x128xf32>
      tpu.vector_store %arg10[%c0_148, %c0_149], %357 {strides = array<i32>} : memref<8x128xf32, #tpu.memory_space<vmem>>, vector<8x128xf32>,
    } else {
    }
    %c0 = arith.constant 0 : index
    %c0_1 = arith.constant 0 : index
    %c0_2 = arith.constant 0 : index
    %3 = vector.load %arg2[%c0, %c0_1, %c0_2] : memref<8x8x32xbf16, #tpu.memory_space<vmem>>, vector<8x8x32xbf16>
    %4 = vector.shape_cast %3 : vector<8x8x32xbf16> to vector<64x32xbf16>
    %c0_3 = arith.constant 0 : index
    %c0_4 = arith.constant 0 : index
    %5 = vector.load %arg3[%c0_3, %c0_4] : memref<32x512xbf16, #tpu.memory_space<vmem>>, vector<32x512xbf16>
    %cst = arith.constant dense<0.000000e+00> : vector<64x512xf32>
    %6 = tpu.matmul %4, %5, %cst {dimension_numbers = #tpu.dot_dimension_numbers<[1], [0], [0], [1], [0, 0, 1, 1], [], []>} : vector<64x32xbf16>, vector<32x512xbf16>, vector<64x512xf32> -> vector<64x512xf32>
    %c0_5 = arith.constant 0 : index
    %c0_6 = arith.constant 0 : index
    %7 = vector.load %arg5[%c0_5, %c0_6] : memref<1x512xf32, #tpu.memory_space<vmem>>, vector<1x512xf32>
    %8 = vector.broadcast %7 : vector<1x512xf32> to vector<64x512xf32>
    %9 = arith.addf %6, %8 : vector<64x512xf32>
    %10 = vector.shape_cast %9 : vector<64x512xf32> to vector<8x8x512xf32>
    %c0_7 = arith.constant 0 : index
    %c0_8 = arith.constant 0 : index
    %c0_9 = arith.constant 0 : index
    %11 = vector.load %arg11[%c0_7, %c0_8, %c0_9] : memref<8x8x512xf32, #tpu.memory_space<vmem>>, vector<8x8x512xf32>
    tpu.vector_store %arg11[%c0_7, %c0_8, %c0_9], %10 {strides = array<i32>} : memref<8x8x512xf32, #tpu.memory_space<vmem>>, vector<8x8x512xf32>,
    %c0_10 = arith.constant 0 : index
    %c0_11 = arith.constant 0 : index
    %12 = vector.load %arg4[%c0_10, %c0_11] : memref<128x512xbf16, #tpu.memory_space<vmem>>, vector<128x512xbf16>
    %c0_12 = arith.constant 0 : index
    %c0_13 = arith.constant 0 : index
    %13 = vector.load %arg9[%c0_12, %c0_13] : memref<8x128xf32, #tpu.memory_space<vmem>>, vector<8x128xf32>
    %c0_14 = arith.constant 0 : index
    %c0_15 = arith.constant 0 : index
    %14 = vector.load %arg10[%c0_14, %c0_15] : memref<8x128xf32, #tpu.memory_space<vmem>>, vector<8x128xf32>
    %c0_i32_16 = arith.constant 0 : i32
    %15 = arith.index_cast %c0_i32_16 : i32 to index
    %c0_17 = arith.constant 0 : index
    %c0_18 = arith.constant 0 : index
    %16 = vector.load %arg11[%15, %c0_17, %c0_18] : memref<8x8x512xf32, #tpu.memory_space<vmem>>, vector<1x8x512xf32>
    %17 = vector.shape_cast %16 : vector<1x8x512xf32> to vector<8x512xf32>
    %18 = arith.truncf %13 : vector<8x128xf32> to vector<8x128xbf16>
    %cst_19 = arith.constant dense<0.000000e+00> : vector<8x512xf32>
    %19 = tpu.matmul %18, %12, %cst_19 {dimension_numbers = #tpu.dot_dimension_numbers<[1], [0], [0], [1], [0, 0, 1, 1], [], []>} : vector<8x128xbf16>, vector<128x512xbf16>, vector<8x512xf32> -> vector<8x512xf32>
    %20 = arith.addf %17, %19 : vector<8x512xf32>
    %21 = vector.extract_strided_slice %20 {offsets = [0, 0], sizes = [8, 128], strides = [1, 1]} : vector<8x512xf32> to vector<8x128xf32>
    %cst_20 = arith.constant 5.000000e-01 : f32
    %22 = vector.broadcast %cst_20 : f32 to vector<8x128xf32>
    %23 = arith.mulf %22, %21 : vector<8x128xf32>
    %24 = math.tanh %23 : vector<8x128xf32>
    %cst_21 = arith.constant 5.000000e-01 : f32
    %25 = vector.broadcast %cst_21 : f32 to vector<8x128xf32>
    %26 = arith.mulf %25, %24 : vector<8x128xf32>
    %cst_22 = arith.constant 5.000000e-01 : f32
    %27 = vector.broadcast %cst_22 : f32 to vector<8x128xf32>
    %28 = arith.addf %26, %27 : vector<8x128xf32>
    %29 = vector.extract_strided_slice %20 {offsets = [0, 128], sizes = [8, 128], strides = [1, 1]} : vector<8x512xf32> to vector<8x128xf32>
    %cst_23 = arith.constant 5.000000e-01 : f32
    %30 = vector.broadcast %cst_23 : f32 to vector<8x128xf32>
    %31 = arith.mulf %30, %29 : vector<8x128xf32>
    %32 = math.tanh %31 : vector<8x128xf32>
    %cst_24 = arith.constant 5.000000e-01 : f32
    %33 = vector.broadcast %cst_24 : f32 to vector<8x128xf32>
    %34 = arith.mulf %33, %32 : vector<8x128xf32>
    %cst_25 = arith.constant 5.000000e-01 : f32
    %35 = vector.broadcast %cst_25 : f32 to vector<8x128xf32>
    %36 = arith.addf %34, %35 : vector<8x128xf32>
    %37 = vector.extract_strided_slice %20 {offsets = [0, 256], sizes = [8, 128], strides = [1, 1]} : vector<8x512xf32> to vector<8x128xf32>
    %38 = math.tanh %37 : vector<8x128xf32>
    %39 = vector.extract_strided_slice %20 {offsets = [0, 384], sizes = [8, 128], strides = [1, 1]} : vector<8x512xf32> to vector<8x128xf32>
    %cst_26 = arith.constant 5.000000e-01 : f32
    %40 = vector.broadcast %cst_26 : f32 to vector<8x128xf32>
    %41 = arith.mulf %40, %39 : vector<8x128xf32>
    %42 = math.tanh %41 : vector<8x128xf32>
    %cst_27 = arith.constant 5.000000e-01 : f32
    %43 = vector.broadcast %cst_27 : f32 to vector<8x128xf32>
    %44 = arith.mulf %43, %42 : vector<8x128xf32>
    %cst_28 = arith.constant 5.000000e-01 : f32
    %45 = vector.broadcast %cst_28 : f32 to vector<8x128xf32>
    %46 = arith.addf %44, %45 : vector<8x128xf32>
    %47 = arith.mulf %36, %14 : vector<8x128xf32>
    %48 = arith.mulf %28, %38 : vector<8x128xf32>
    %49 = arith.addf %47, %48 : vector<8x128xf32>
    %50 = math.tanh %49 : vector<8x128xf32>
    %51 = arith.mulf %46, %50 : vector<8x128xf32>
    %52 = arith.index_cast %c0_i32_16 : i32 to index
    %c0_29 = arith.constant 0 : index
    %c0_30 = arith.constant 0 : index
    %53 = vector.load %arg12[%52, %c0_29, %c0_30] : memref<8x8x128xf32, #tpu.memory_space<vmem>>, vector<1x8x128xf32>
    %54 = vector.shape_cast %53 : vector<1x8x128xf32> to vector<8x128xf32>
    %55 = vector.shape_cast %51 : vector<8x128xf32> to vector<1x8x128xf32>
    tpu.vector_store %arg12[%52, %c0_29, %c0_30], %55 {strides = array<i32>} : memref<8x8x128xf32, #tpu.memory_space<vmem>>, vector<1x8x128xf32>,
    %c1_i32 = arith.constant 1 : i32
    %56 = arith.index_cast %c1_i32 : i32 to index
    %c0_31 = arith.constant 0 : index
    %c0_32 = arith.constant 0 : index
    %57 = vector.load %arg11[%56, %c0_31, %c0_32] : memref<8x8x512xf32, #tpu.memory_space<vmem>>, vector<1x8x512xf32>
    %58 = vector.shape_cast %57 : vector<1x8x512xf32> to vector<8x512xf32>
    %59 = arith.truncf %51 : vector<8x128xf32> to vector<8x128xbf16>
    %cst_33 = arith.constant dense<0.000000e+00> : vector<8x512xf32>
    %60 = tpu.matmul %59, %12, %cst_33 {dimension_numbers = #tpu.dot_dimension_numbers<[1], [0], [0], [1], [0, 0, 1, 1], [], []>} : vector<8x128xbf16>, vector<128x512xbf16>, vector<8x512xf32> -> vector<8x512xf32>
    %61 = arith.addf %58, %60 : vector<8x512xf32>
    %62 = vector.extract_strided_slice %61 {offsets = [0, 0], sizes = [8, 128], strides = [1, 1]} : vector<8x512xf32> to vector<8x128xf32>
    %cst_34 = arith.constant 5.000000e-01 : f32
    %63 = vector.broadcast %cst_34 : f32 to vector<8x128xf32>
    %64 = arith.mulf %63, %62 : vector<8x128xf32>
    %65 = math.tanh %64 : vector<8x128xf32>
    %cst_35 = arith.constant 5.000000e-01 : f32
    %66 = vector.broadcast %cst_35 : f32 to vector<8x128xf32>
    %67 = arith.mulf %66, %65 : vector<8x128xf32>
    %cst_36 = arith.constant 5.000000e-01 : f32
    %68 = vector.broadcast %cst_36 : f32 to vector<8x128xf32>
    %69 = arith.addf %67, %68 : vector<8x128xf32>
    %70 = vector.extract_strided_slice %61 {offsets = [0, 128], sizes = [8, 128], strides = [1, 1]} : vector<8x512xf32> to vector<8x128xf32>
    %cst_37 = arith.constant 5.000000e-01 : f32
    %71 = vector.broadcast %cst_37 : f32 to vector<8x128xf32>
    %72 = arith.mulf %71, %70 : vector<8x128xf32>
    %73 = math.tanh %72 : vector<8x128xf32>
    %cst_38 = arith.constant 5.000000e-01 : f32
    %74 = vector.broadcast %cst_38 : f32 to vector<8x128xf32>
    %75 = arith.mulf %74, %73 : vector<8x128xf32>
    %cst_39 = arith.constant 5.000000e-01 : f32
    %76 = vector.broadcast %cst_39 : f32 to vector<8x128xf32>
    %77 = arith.addf %75, %76 : vector<8x128xf32>
    %78 = vector.extract_strided_slice %61 {offsets = [0, 256], sizes = [8, 128], strides = [1, 1]} : vector<8x512xf32> to vector<8x128xf32>
    %79 = math.tanh %78 : vector<8x128xf32>
    %80 = vector.extract_strided_slice %61 {offsets = [0, 384], sizes = [8, 128], strides = [1, 1]} : vector<8x512xf32> to vector<8x128xf32>
    %cst_40 = arith.constant 5.000000e-01 : f32
    %81 = vector.broadcast %cst_40 : f32 to vector<8x128xf32>
    %82 = arith.mulf %81, %80 : vector<8x128xf32>
    %83 = math.tanh %82 : vector<8x128xf32>
    %cst_41 = arith.constant 5.000000e-01 : f32
    %84 = vector.broadcast %cst_41 : f32 to vector<8x128xf32>
    %85 = arith.mulf %84, %83 : vector<8x128xf32>
    %cst_42 = arith.constant 5.000000e-01 : f32
    %86 = vector.broadcast %cst_42 : f32 to vector<8x128xf32>
    %87 = arith.addf %85, %86 : vector<8x128xf32>
    %88 = arith.mulf %77, %49 : vector<8x128xf32>
    %89 = arith.mulf %69, %79 : vector<8x128xf32>
    %90 = arith.addf %88, %89 : vector<8x128xf32>
    %91 = math.tanh %90 : vector<8x128xf32>
    %92 = arith.mulf %87, %91 : vector<8x128xf32>
    %93 = arith.index_cast %c1_i32 : i32 to index
    %c0_43 = arith.constant 0 : index
    %c0_44 = arith.constant 0 : index
    %94 = vector.load %arg12[%93, %c0_43, %c0_44] : memref<8x8x128xf32, #tpu.memory_space<vmem>>, vector<1x8x128xf32>
    %95 = vector.shape_cast %94 : vector<1x8x128xf32> to vector<8x128xf32>
    %96 = vector.shape_cast %92 : vector<8x128xf32> to vector<1x8x128xf32>
    tpu.vector_store %arg12[%93, %c0_43, %c0_44], %96 {strides = array<i32>} : memref<8x8x128xf32, #tpu.memory_space<vmem>>, vector<1x8x128xf32>,
    %c2_i32 = arith.constant 2 : i32
    %97 = arith.index_cast %c2_i32 : i32 to index
    %c0_45 = arith.constant 0 : index
    %c0_46 = arith.constant 0 : index
    %98 = vector.load %arg11[%97, %c0_45, %c0_46] : memref<8x8x512xf32, #tpu.memory_space<vmem>>, vector<1x8x512xf32>
    %99 = vector.shape_cast %98 : vector<1x8x512xf32> to vector<8x512xf32>
    %100 = arith.truncf %92 : vector<8x128xf32> to vector<8x128xbf16>
    %cst_47 = arith.constant dense<0.000000e+00> : vector<8x512xf32>
    %101 = tpu.matmul %100, %12, %cst_47 {dimension_numbers = #tpu.dot_dimension_numbers<[1], [0], [0], [1], [0, 0, 1, 1], [], []>} : vector<8x128xbf16>, vector<128x512xbf16>, vector<8x512xf32> -> vector<8x512xf32>
    %102 = arith.addf %99, %101 : vector<8x512xf32>
    %103 = vector.extract_strided_slice %102 {offsets = [0, 0], sizes = [8, 128], strides = [1, 1]} : vector<8x512xf32> to vector<8x128xf32>
    %cst_48 = arith.constant 5.000000e-01 : f32
    %104 = vector.broadcast %cst_48 : f32 to vector<8x128xf32>
    %105 = arith.mulf %104, %103 : vector<8x128xf32>
    %106 = math.tanh %105 : vector<8x128xf32>
    %cst_49 = arith.constant 5.000000e-01 : f32
    %107 = vector.broadcast %cst_49 : f32 to vector<8x128xf32>
    %108 = arith.mulf %107, %106 : vector<8x128xf32>
    %cst_50 = arith.constant 5.000000e-01 : f32
    %109 = vector.broadcast %cst_50 : f32 to vector<8x128xf32>
    %110 = arith.addf %108, %109 : vector<8x128xf32>
    %111 = vector.extract_strided_slice %102 {offsets = [0, 128], sizes = [8, 128], strides = [1, 1]} : vector<8x512xf32> to vector<8x128xf32>
    %cst_51 = arith.constant 5.000000e-01 : f32
    %112 = vector.broadcast %cst_51 : f32 to vector<8x128xf32>
    %113 = arith.mulf %112, %111 : vector<8x128xf32>
    %114 = math.tanh %113 : vector<8x128xf32>
    %cst_52 = arith.constant 5.000000e-01 : f32
    %115 = vector.broadcast %cst_52 : f32 to vector<8x128xf32>
    %116 = arith.mulf %115, %114 : vector<8x128xf32>
    %cst_53 = arith.constant 5.000000e-01 : f32
    %117 = vector.broadcast %cst_53 : f32 to vector<8x128xf32>
    %118 = arith.addf %116, %117 : vector<8x128xf32>
    %119 = vector.extract_strided_slice %102 {offsets = [0, 256], sizes = [8, 128], strides = [1, 1]} : vector<8x512xf32> to vector<8x128xf32>
    %120 = math.tanh %119 : vector<8x128xf32>
    %121 = vector.extract_strided_slice %102 {offsets = [0, 384], sizes = [8, 128], strides = [1, 1]} : vector<8x512xf32> to vector<8x128xf32>
    %cst_54 = arith.constant 5.000000e-01 : f32
    %122 = vector.broadcast %cst_54 : f32 to vector<8x128xf32>
    %123 = arith.mulf %122, %121 : vector<8x128xf32>
    %124 = math.tanh %123 : vector<8x128xf32>
    %cst_55 = arith.constant 5.000000e-01 : f32
    %125 = vector.broadcast %cst_55 : f32 to vector<8x128xf32>
    %126 = arith.mulf %125, %124 : vector<8x128xf32>
    %cst_56 = arith.constant 5.000000e-01 : f32
    %127 = vector.broadcast %cst_56 : f32 to vector<8x128xf32>
    %128 = arith.addf %126, %127 : vector<8x128xf32>
    %129 = arith.mulf %118, %90 : vector<8x128xf32>
    %130 = arith.mulf %110, %120 : vector<8x128xf32>
    %131 = arith.addf %129, %130 : vector<8x128xf32>
    %132 = math.tanh %131 : vector<8x128xf32>
    %133 = arith.mulf %128, %132 : vector<8x128xf32>
    %134 = arith.index_cast %c2_i32 : i32 to index
    %c0_57 = arith.constant 0 : index
    %c0_58 = arith.constant 0 : index
    %135 = vector.load %arg12[%134, %c0_57, %c0_58] : memref<8x8x128xf32, #tpu.memory_space<vmem>>, vector<1x8x128xf32>
    %136 = vector.shape_cast %135 : vector<1x8x128xf32> to vector<8x128xf32>
    %137 = vector.shape_cast %133 : vector<8x128xf32> to vector<1x8x128xf32>
    tpu.vector_store %arg12[%134, %c0_57, %c0_58], %137 {strides = array<i32>} : memref<8x8x128xf32, #tpu.memory_space<vmem>>, vector<1x8x128xf32>,
    %c3_i32 = arith.constant 3 : i32
    %138 = arith.index_cast %c3_i32 : i32 to index
    %c0_59 = arith.constant 0 : index
    %c0_60 = arith.constant 0 : index
    %139 = vector.load %arg11[%138, %c0_59, %c0_60] : memref<8x8x512xf32, #tpu.memory_space<vmem>>, vector<1x8x512xf32>
    %140 = vector.shape_cast %139 : vector<1x8x512xf32> to vector<8x512xf32>
    %141 = arith.truncf %133 : vector<8x128xf32> to vector<8x128xbf16>
    %cst_61 = arith.constant dense<0.000000e+00> : vector<8x512xf32>
    %142 = tpu.matmul %141, %12, %cst_61 {dimension_numbers = #tpu.dot_dimension_numbers<[1], [0], [0], [1], [0, 0, 1, 1], [], []>} : vector<8x128xbf16>, vector<128x512xbf16>, vector<8x512xf32> -> vector<8x512xf32>
    %143 = arith.addf %140, %142 : vector<8x512xf32>
    %144 = vector.extract_strided_slice %143 {offsets = [0, 0], sizes = [8, 128], strides = [1, 1]} : vector<8x512xf32> to vector<8x128xf32>
    %cst_62 = arith.constant 5.000000e-01 : f32
    %145 = vector.broadcast %cst_62 : f32 to vector<8x128xf32>
    %146 = arith.mulf %145, %144 : vector<8x128xf32>
    %147 = math.tanh %146 : vector<8x128xf32>
    %cst_63 = arith.constant 5.000000e-01 : f32
    %148 = vector.broadcast %cst_63 : f32 to vector<8x128xf32>
    %149 = arith.mulf %148, %147 : vector<8x128xf32>
    %cst_64 = arith.constant 5.000000e-01 : f32
    %150 = vector.broadcast %cst_64 : f32 to vector<8x128xf32>
    %151 = arith.addf %149, %150 : vector<8x128xf32>
    %152 = vector.extract_strided_slice %143 {offsets = [0, 128], sizes = [8, 128], strides = [1, 1]} : vector<8x512xf32> to vector<8x128xf32>
    %cst_65 = arith.constant 5.000000e-01 : f32
    %153 = vector.broadcast %cst_65 : f32 to vector<8x128xf32>
    %154 = arith.mulf %153, %152 : vector<8x128xf32>
    %155 = math.tanh %154 : vector<8x128xf32>
    %cst_66 = arith.constant 5.000000e-01 : f32
    %156 = vector.broadcast %cst_66 : f32 to vector<8x128xf32>
    %157 = arith.mulf %156, %155 : vector<8x128xf32>
    %cst_67 = arith.constant 5.000000e-01 : f32
    %158 = vector.broadcast %cst_67 : f32 to vector<8x128xf32>
    %159 = arith.addf %157, %158 : vector<8x128xf32>
    %160 = vector.extract_strided_slice %143 {offsets = [0, 256], sizes = [8, 128], strides = [1, 1]} : vector<8x512xf32> to vector<8x128xf32>
    %161 = math.tanh %160 : vector<8x128xf32>
    %162 = vector.extract_strided_slice %143 {offsets = [0, 384], sizes = [8, 128], strides = [1, 1]} : vector<8x512xf32> to vector<8x128xf32>
    %cst_68 = arith.constant 5.000000e-01 : f32
    %163 = vector.broadcast %cst_68 : f32 to vector<8x128xf32>
    %164 = arith.mulf %163, %162 : vector<8x128xf32>
    %165 = math.tanh %164 : vector<8x128xf32>
    %cst_69 = arith.constant 5.000000e-01 : f32
    %166 = vector.broadcast %cst_69 : f32 to vector<8x128xf32>
    %167 = arith.mulf %166, %165 : vector<8x128xf32>
    %cst_70 = arith.constant 5.000000e-01 : f32
    %168 = vector.broadcast %cst_70 : f32 to vector<8x128xf32>
    %169 = arith.addf %167, %168 : vector<8x128xf32>
    %170 = arith.mulf %159, %131 : vector<8x128xf32>
    %171 = arith.mulf %151, %161 : vector<8x128xf32>
    %172 = arith.addf %170, %171 : vector<8x128xf32>
    %173 = math.tanh %172 : vector<8x128xf32>
    %174 = arith.mulf %169, %173 : vector<8x128xf32>
    %175 = arith.index_cast %c3_i32 : i32 to index
    %c0_71 = arith.constant 0 : index
    %c0_72 = arith.constant 0 : index
    %176 = vector.load %arg12[%175, %c0_71, %c0_72] : memref<8x8x128xf32, #tpu.memory_space<vmem>>, vector<1x8x128xf32>
    %177 = vector.shape_cast %176 : vector<1x8x128xf32> to vector<8x128xf32>
    %178 = vector.shape_cast %174 : vector<8x128xf32> to vector<1x8x128xf32>
    tpu.vector_store %arg12[%175, %c0_71, %c0_72], %178 {strides = array<i32>} : memref<8x8x128xf32, #tpu.memory_space<vmem>>, vector<1x8x128xf32>,
    %c4_i32 = arith.constant 4 : i32
    %179 = arith.index_cast %c4_i32 : i32 to index
    %c0_73 = arith.constant 0 : index
    %c0_74 = arith.constant 0 : index
    %180 = vector.load %arg11[%179, %c0_73, %c0_74] : memref<8x8x512xf32, #tpu.memory_space<vmem>>, vector<1x8x512xf32>
    %181 = vector.shape_cast %180 : vector<1x8x512xf32> to vector<8x512xf32>
    %182 = arith.truncf %174 : vector<8x128xf32> to vector<8x128xbf16>
    %cst_75 = arith.constant dense<0.000000e+00> : vector<8x512xf32>
    %183 = tpu.matmul %182, %12, %cst_75 {dimension_numbers = #tpu.dot_dimension_numbers<[1], [0], [0], [1], [0, 0, 1, 1], [], []>} : vector<8x128xbf16>, vector<128x512xbf16>, vector<8x512xf32> -> vector<8x512xf32>
    %184 = arith.addf %181, %183 : vector<8x512xf32>
    %185 = vector.extract_strided_slice %184 {offsets = [0, 0], sizes = [8, 128], strides = [1, 1]} : vector<8x512xf32> to vector<8x128xf32>
    %cst_76 = arith.constant 5.000000e-01 : f32
    %186 = vector.broadcast %cst_76 : f32 to vector<8x128xf32>
    %187 = arith.mulf %186, %185 : vector<8x128xf32>
    %188 = math.tanh %187 : vector<8x128xf32>
    %cst_77 = arith.constant 5.000000e-01 : f32
    %189 = vector.broadcast %cst_77 : f32 to vector<8x128xf32>
    %190 = arith.mulf %189, %188 : vector<8x128xf32>
    %cst_78 = arith.constant 5.000000e-01 : f32
    %191 = vector.broadcast %cst_78 : f32 to vector<8x128xf32>
    %192 = arith.addf %190, %191 : vector<8x128xf32>
    %193 = vector.extract_strided_slice %184 {offsets = [0, 128], sizes = [8, 128], strides = [1, 1]} : vector<8x512xf32> to vector<8x128xf32>
    %cst_79 = arith.constant 5.000000e-01 : f32
    %194 = vector.broadcast %cst_79 : f32 to vector<8x128xf32>
    %195 = arith.mulf %194, %193 : vector<8x128xf32>
    %196 = math.tanh %195 : vector<8x128xf32>
    %cst_80 = arith.constant 5.000000e-01 : f32
    %197 = vector.broadcast %cst_80 : f32 to vector<8x128xf32>
    %198 = arith.mulf %197, %196 : vector<8x128xf32>
    %cst_81 = arith.constant 5.000000e-01 : f32
    %199 = vector.broadcast %cst_81 : f32 to vector<8x128xf32>
    %200 = arith.addf %198, %199 : vector<8x128xf32>
    %201 = vector.extract_strided_slice %184 {offsets = [0, 256], sizes = [8, 128], strides = [1, 1]} : vector<8x512xf32> to vector<8x128xf32>
    %202 = math.tanh %201 : vector<8x128xf32>
    %203 = vector.extract_strided_slice %184 {offsets = [0, 384], sizes = [8, 128], strides = [1, 1]} : vector<8x512xf32> to vector<8x128xf32>
    %cst_82 = arith.constant 5.000000e-01 : f32
    %204 = vector.broadcast %cst_82 : f32 to vector<8x128xf32>
    %205 = arith.mulf %204, %203 : vector<8x128xf32>
    %206 = math.tanh %205 : vector<8x128xf32>
    %cst_83 = arith.constant 5.000000e-01 : f32
    %207 = vector.broadcast %cst_83 : f32 to vector<8x128xf32>
    %208 = arith.mulf %207, %206 : vector<8x128xf32>
    %cst_84 = arith.constant 5.000000e-01 : f32
    %209 = vector.broadcast %cst_84 : f32 to vector<8x128xf32>
    %210 = arith.addf %208, %209 : vector<8x128xf32>
    %211 = arith.mulf %200, %172 : vector<8x128xf32>
    %212 = arith.mulf %192, %202 : vector<8x128xf32>
    %213 = arith.addf %211, %212 : vector<8x128xf32>
    %214 = math.tanh %213 : vector<8x128xf32>
    %215 = arith.mulf %210, %214 : vector<8x128xf32>
    %216 = arith.index_cast %c4_i32 : i32 to index
    %c0_85 = arith.constant 0 : index
    %c0_86 = arith.constant 0 : index
    %217 = vector.load %arg12[%216, %c0_85, %c0_86] : memref<8x8x128xf32, #tpu.memory_space<vmem>>, vector<1x8x128xf32>
    %218 = vector.shape_cast %217 : vector<1x8x128xf32> to vector<8x128xf32>
    %219 = vector.shape_cast %215 : vector<8x128xf32> to vector<1x8x128xf32>
    tpu.vector_store %arg12[%216, %c0_85, %c0_86], %219 {strides = array<i32>} : memref<8x8x128xf32, #tpu.memory_space<vmem>>, vector<1x8x128xf32>,
    %c5_i32 = arith.constant 5 : i32
    %220 = arith.index_cast %c5_i32 : i32 to index
    %c0_87 = arith.constant 0 : index
    %c0_88 = arith.constant 0 : index
    %221 = vector.load %arg11[%220, %c0_87, %c0_88] : memref<8x8x512xf32, #tpu.memory_space<vmem>>, vector<1x8x512xf32>
    %222 = vector.shape_cast %221 : vector<1x8x512xf32> to vector<8x512xf32>
    %223 = arith.truncf %215 : vector<8x128xf32> to vector<8x128xbf16>
    %cst_89 = arith.constant dense<0.000000e+00> : vector<8x512xf32>
    %224 = tpu.matmul %223, %12, %cst_89 {dimension_numbers = #tpu.dot_dimension_numbers<[1], [0], [0], [1], [0, 0, 1, 1], [], []>} : vector<8x128xbf16>, vector<128x512xbf16>, vector<8x512xf32> -> vector<8x512xf32>
    %225 = arith.addf %222, %224 : vector<8x512xf32>
    %226 = vector.extract_strided_slice %225 {offsets = [0, 0], sizes = [8, 128], strides = [1, 1]} : vector<8x512xf32> to vector<8x128xf32>
    %cst_90 = arith.constant 5.000000e-01 : f32
    %227 = vector.broadcast %cst_90 : f32 to vector<8x128xf32>
    %228 = arith.mulf %227, %226 : vector<8x128xf32>
    %229 = math.tanh %228 : vector<8x128xf32>
    %cst_91 = arith.constant 5.000000e-01 : f32
    %230 = vector.broadcast %cst_91 : f32 to vector<8x128xf32>
    %231 = arith.mulf %230, %229 : vector<8x128xf32>
    %cst_92 = arith.constant 5.000000e-01 : f32
    %232 = vector.broadcast %cst_92 : f32 to vector<8x128xf32>
    %233 = arith.addf %231, %232 : vector<8x128xf32>
    %234 = vector.extract_strided_slice %225 {offsets = [0, 128], sizes = [8, 128], strides = [1, 1]} : vector<8x512xf32> to vector<8x128xf32>
    %cst_93 = arith.constant 5.000000e-01 : f32
    %235 = vector.broadcast %cst_93 : f32 to vector<8x128xf32>
    %236 = arith.mulf %235, %234 : vector<8x128xf32>
    %237 = math.tanh %236 : vector<8x128xf32>
    %cst_94 = arith.constant 5.000000e-01 : f32
    %238 = vector.broadcast %cst_94 : f32 to vector<8x128xf32>
    %239 = arith.mulf %238, %237 : vector<8x128xf32>
    %cst_95 = arith.constant 5.000000e-01 : f32
    %240 = vector.broadcast %cst_95 : f32 to vector<8x128xf32>
    %241 = arith.addf %239, %240 : vector<8x128xf32>
    %242 = vector.extract_strided_slice %225 {offsets = [0, 256], sizes = [8, 128], strides = [1, 1]} : vector<8x512xf32> to vector<8x128xf32>
    %243 = math.tanh %242 : vector<8x128xf32>
    %244 = vector.extract_strided_slice %225 {offsets = [0, 384], sizes = [8, 128], strides = [1, 1]} : vector<8x512xf32> to vector<8x128xf32>
    %cst_96 = arith.constant 5.000000e-01 : f32
    %245 = vector.broadcast %cst_96 : f32 to vector<8x128xf32>
    %246 = arith.mulf %245, %244 : vector<8x128xf32>
    %247 = math.tanh %246 : vector<8x128xf32>
    %cst_97 = arith.constant 5.000000e-01 : f32
    %248 = vector.broadcast %cst_97 : f32 to vector<8x128xf32>
    %249 = arith.mulf %248, %247 : vector<8x128xf32>
    %cst_98 = arith.constant 5.000000e-01 : f32
    %250 = vector.broadcast %cst_98 : f32 to vector<8x128xf32>
    %251 = arith.addf %249, %250 : vector<8x128xf32>
    %252 = arith.mulf %241, %213 : vector<8x128xf32>
    %253 = arith.mulf %233, %243 : vector<8x128xf32>
    %254 = arith.addf %252, %253 : vector<8x128xf32>
    %255 = math.tanh %254 : vector<8x128xf32>
    %256 = arith.mulf %251, %255 : vector<8x128xf32>
    %257 = arith.index_cast %c5_i32 : i32 to index
    %c0_99 = arith.constant 0 : index
    %c0_100 = arith.constant 0 : index
    %258 = vector.load %arg12[%257, %c0_99, %c0_100] : memref<8x8x128xf32, #tpu.memory_space<vmem>>, vector<1x8x128xf32>
    %259 = vector.shape_cast %258 : vector<1x8x128xf32> to vector<8x128xf32>
    %260 = vector.shape_cast %256 : vector<8x128xf32> to vector<1x8x128xf32>
    tpu.vector_store %arg12[%257, %c0_99, %c0_100], %260 {strides = array<i32>} : memref<8x8x128xf32, #tpu.memory_space<vmem>>, vector<1x8x128xf32>,
    %c6_i32 = arith.constant 6 : i32
    %261 = arith.index_cast %c6_i32 : i32 to index
    %c0_101 = arith.constant 0 : index
    %c0_102 = arith.constant 0 : index
    %262 = vector.load %arg11[%261, %c0_101, %c0_102] : memref<8x8x512xf32, #tpu.memory_space<vmem>>, vector<1x8x512xf32>
    %263 = vector.shape_cast %262 : vector<1x8x512xf32> to vector<8x512xf32>
    %264 = arith.truncf %256 : vector<8x128xf32> to vector<8x128xbf16>
    %cst_103 = arith.constant dense<0.000000e+00> : vector<8x512xf32>
    %265 = tpu.matmul %264, %12, %cst_103 {dimension_numbers = #tpu.dot_dimension_numbers<[1], [0], [0], [1], [0, 0, 1, 1], [], []>} : vector<8x128xbf16>, vector<128x512xbf16>, vector<8x512xf32> -> vector<8x512xf32>
    %266 = arith.addf %263, %265 : vector<8x512xf32>
    %267 = vector.extract_strided_slice %266 {offsets = [0, 0], sizes = [8, 128], strides = [1, 1]} : vector<8x512xf32> to vector<8x128xf32>
    %cst_104 = arith.constant 5.000000e-01 : f32
    %268 = vector.broadcast %cst_104 : f32 to vector<8x128xf32>
    %269 = arith.mulf %268, %267 : vector<8x128xf32>
    %270 = math.tanh %269 : vector<8x128xf32>
    %cst_105 = arith.constant 5.000000e-01 : f32
    %271 = vector.broadcast %cst_105 : f32 to vector<8x128xf32>
    %272 = arith.mulf %271, %270 : vector<8x128xf32>
    %cst_106 = arith.constant 5.000000e-01 : f32
    %273 = vector.broadcast %cst_106 : f32 to vector<8x128xf32>
    %274 = arith.addf %272, %273 : vector<8x128xf32>
    %275 = vector.extract_strided_slice %266 {offsets = [0, 128], sizes = [8, 128], strides = [1, 1]} : vector<8x512xf32> to vector<8x128xf32>
    %cst_107 = arith.constant 5.000000e-01 : f32
    %276 = vector.broadcast %cst_107 : f32 to vector<8x128xf32>
    %277 = arith.mulf %276, %275 : vector<8x128xf32>
    %278 = math.tanh %277 : vector<8x128xf32>
    %cst_108 = arith.constant 5.000000e-01 : f32
    %279 = vector.broadcast %cst_108 : f32 to vector<8x128xf32>
    %280 = arith.mulf %279, %278 : vector<8x128xf32>
    %cst_109 = arith.constant 5.000000e-01 : f32
    %281 = vector.broadcast %cst_109 : f32 to vector<8x128xf32>
    %282 = arith.addf %280, %281 : vector<8x128xf32>
    %283 = vector.extract_strided_slice %266 {offsets = [0, 256], sizes = [8, 128], strides = [1, 1]} : vector<8x512xf32> to vector<8x128xf32>
    %284 = math.tanh %283 : vector<8x128xf32>
    %285 = vector.extract_strided_slice %266 {offsets = [0, 384], sizes = [8, 128], strides = [1, 1]} : vector<8x512xf32> to vector<8x128xf32>
    %cst_110 = arith.constant 5.000000e-01 : f32
    %286 = vector.broadcast %cst_110 : f32 to vector<8x128xf32>
    %287 = arith.mulf %286, %285 : vector<8x128xf32>
    %288 = math.tanh %287 : vector<8x128xf32>
    %cst_111 = arith.constant 5.000000e-01 : f32
    %289 = vector.broadcast %cst_111 : f32 to vector<8x128xf32>
    %290 = arith.mulf %289, %288 : vector<8x128xf32>
    %cst_112 = arith.constant 5.000000e-01 : f32
    %291 = vector.broadcast %cst_112 : f32 to vector<8x128xf32>
    %292 = arith.addf %290, %291 : vector<8x128xf32>
    %293 = arith.mulf %282, %254 : vector<8x128xf32>
    %294 = arith.mulf %274, %284 : vector<8x128xf32>
    %295 = arith.addf %293, %294 : vector<8x128xf32>
    %296 = math.tanh %295 : vector<8x128xf32>
    %297 = arith.mulf %292, %296 : vector<8x128xf32>
    %298 = arith.index_cast %c6_i32 : i32 to index
    %c0_113 = arith.constant 0 : index
    %c0_114 = arith.constant 0 : index
    %299 = vector.load %arg12[%298, %c0_113, %c0_114] : memref<8x8x128xf32, #tpu.memory_space<vmem>>, vector<1x8x128xf32>
    %300 = vector.shape_cast %299 : vector<1x8x128xf32> to vector<8x128xf32>
    %301 = vector.shape_cast %297 : vector<8x128xf32> to vector<1x8x128xf32>
    tpu.vector_store %arg12[%298, %c0_113, %c0_114], %301 {strides = array<i32>} : memref<8x8x128xf32, #tpu.memory_space<vmem>>, vector<1x8x128xf32>,
    %c7_i32 = arith.constant 7 : i32
    %302 = arith.index_cast %c7_i32 : i32 to index
    %c0_115 = arith.constant 0 : index
    %c0_116 = arith.constant 0 : index
    %303 = vector.load %arg11[%302, %c0_115, %c0_116] : memref<8x8x512xf32, #tpu.memory_space<vmem>>, vector<1x8x512xf32>
    %304 = vector.shape_cast %303 : vector<1x8x512xf32> to vector<8x512xf32>
    %305 = arith.truncf %297 : vector<8x128xf32> to vector<8x128xbf16>
    %cst_117 = arith.constant dense<0.000000e+00> : vector<8x512xf32>
    %306 = tpu.matmul %305, %12, %cst_117 {dimension_numbers = #tpu.dot_dimension_numbers<[1], [0], [0], [1], [0, 0, 1, 1], [], []>} : vector<8x128xbf16>, vector<128x512xbf16>, vector<8x512xf32> -> vector<8x512xf32>
    %307 = arith.addf %304, %306 : vector<8x512xf32>
    %308 = vector.extract_strided_slice %307 {offsets = [0, 0], sizes = [8, 128], strides = [1, 1]} : vector<8x512xf32> to vector<8x128xf32>
    %cst_118 = arith.constant 5.000000e-01 : f32
    %309 = vector.broadcast %cst_118 : f32 to vector<8x128xf32>
    %310 = arith.mulf %309, %308 : vector<8x128xf32>
    %311 = math.tanh %310 : vector<8x128xf32>
    %cst_119 = arith.constant 5.000000e-01 : f32
    %312 = vector.broadcast %cst_119 : f32 to vector<8x128xf32>
    %313 = arith.mulf %312, %311 : vector<8x128xf32>
    %cst_120 = arith.constant 5.000000e-01 : f32
    %314 = vector.broadcast %cst_120 : f32 to vector<8x128xf32>
    %315 = arith.addf %313, %314 : vector<8x128xf32>
    %316 = vector.extract_strided_slice %307 {offsets = [0, 128], sizes = [8, 128], strides = [1, 1]} : vector<8x512xf32> to vector<8x128xf32>
    %cst_121 = arith.constant 5.000000e-01 : f32
    %317 = vector.broadcast %cst_121 : f32 to vector<8x128xf32>
    %318 = arith.mulf %317, %316 : vector<8x128xf32>
    %319 = math.tanh %318 : vector<8x128xf32>
    %cst_122 = arith.constant 5.000000e-01 : f32
    %320 = vector.broadcast %cst_122 : f32 to vector<8x128xf32>
    %321 = arith.mulf %320, %319 : vector<8x128xf32>
    %cst_123 = arith.constant 5.000000e-01 : f32
    %322 = vector.broadcast %cst_123 : f32 to vector<8x128xf32>
    %323 = arith.addf %321, %322 : vector<8x128xf32>
    %324 = vector.extract_strided_slice %307 {offsets = [0, 256], sizes = [8, 128], strides = [1, 1]} : vector<8x512xf32> to vector<8x128xf32>
    %325 = math.tanh %324 : vector<8x128xf32>
    %326 = vector.extract_strided_slice %307 {offsets = [0, 384], sizes = [8, 128], strides = [1, 1]} : vector<8x512xf32> to vector<8x128xf32>
    %cst_124 = arith.constant 5.000000e-01 : f32
    %327 = vector.broadcast %cst_124 : f32 to vector<8x128xf32>
    %328 = arith.mulf %327, %326 : vector<8x128xf32>
    %329 = math.tanh %328 : vector<8x128xf32>
    %cst_125 = arith.constant 5.000000e-01 : f32
    %330 = vector.broadcast %cst_125 : f32 to vector<8x128xf32>
    %331 = arith.mulf %330, %329 : vector<8x128xf32>
    %cst_126 = arith.constant 5.000000e-01 : f32
    %332 = vector.broadcast %cst_126 : f32 to vector<8x128xf32>
    %333 = arith.addf %331, %332 : vector<8x128xf32>
    %334 = arith.mulf %323, %295 : vector<8x128xf32>
    %335 = arith.mulf %315, %325 : vector<8x128xf32>
    %336 = arith.addf %334, %335 : vector<8x128xf32>
    %337 = math.tanh %336 : vector<8x128xf32>
    %338 = arith.mulf %333, %337 : vector<8x128xf32>
    %339 = arith.index_cast %c7_i32 : i32 to index
    %c0_127 = arith.constant 0 : index
    %c0_128 = arith.constant 0 : index
    %340 = vector.load %arg12[%339, %c0_127, %c0_128] : memref<8x8x128xf32, #tpu.memory_space<vmem>>, vector<1x8x128xf32>
    %341 = vector.shape_cast %340 : vector<1x8x128xf32> to vector<8x128xf32>
    %342 = vector.shape_cast %338 : vector<8x128xf32> to vector<1x8x128xf32>
    tpu.vector_store %arg12[%339, %c0_127, %c0_128], %342 {strides = array<i32>} : memref<8x8x128xf32, #tpu.memory_space<vmem>>, vector<1x8x128xf32>,
    %c8_i32 = arith.constant 8 : i32
    %c0_129 = arith.constant 0 : index
    %c0_130 = arith.constant 0 : index
    %343 = vector.load %arg9[%c0_129, %c0_130] : memref<8x128xf32, #tpu.memory_space<vmem>>, vector<8x128xf32>
    tpu.vector_store %arg9[%c0_129, %c0_130], %338 {strides = array<i32>} : memref<8x128xf32, #tpu.memory_space<vmem>>, vector<8x128xf32>,
    %c0_131 = arith.constant 0 : index
    %c0_132 = arith.constant 0 : index
    %344 = vector.load %arg10[%c0_131, %c0_132] : memref<8x128xf32, #tpu.memory_space<vmem>>, vector<8x128xf32>
    tpu.vector_store %arg10[%c0_131, %c0_132], %336 {strides = array<i32>} : memref<8x128xf32, #tpu.memory_space<vmem>>, vector<8x128xf32>,
    %c0_133 = arith.constant 0 : index
    %c0_134 = arith.constant 0 : index
    %c0_135 = arith.constant 0 : index
    %345 = vector.load %arg12[%c0_133, %c0_134, %c0_135] : memref<8x8x128xf32, #tpu.memory_space<vmem>>, vector<8x8x128xf32>
    %346 = vector.shape_cast %345 : vector<8x8x128xf32> to vector<64x128xf32>
    %347 = arith.truncf %346 : vector<64x128xf32> to vector<64x128xbf16>
    %c0_136 = arith.constant 0 : index
    %c0_137 = arith.constant 0 : index
    %348 = vector.load %arg6[%c0_136, %c0_137] : memref<128x128xbf16, #tpu.memory_space<vmem>>, vector<128x128xbf16>
    %cst_138 = arith.constant dense<0.000000e+00> : vector<64x128xf32>
    %349 = tpu.matmul %347, %348, %cst_138 {dimension_numbers = #tpu.dot_dimension_numbers<[1], [0], [0], [1], [0, 0, 1, 1], [], []>} : vector<64x128xbf16>, vector<128x128xbf16>, vector<64x128xf32> -> vector<64x128xf32>
    %c0_139 = arith.constant 0 : index
    %c0_140 = arith.constant 0 : index
    %350 = vector.load %arg7[%c0_139, %c0_140] : memref<1x128xf32, #tpu.memory_space<vmem>>, vector<1x128xf32>
    %351 = vector.broadcast %350 : vector<1x128xf32> to vector<64x128xf32>
    %352 = arith.addf %349, %351 : vector<64x128xf32>
    %353 = vector.shape_cast %352 : vector<64x128xf32> to vector<8x8x128xf32>
    %c0_141 = arith.constant 0 : index
    %c0_142 = arith.constant 0 : index
    %c0_143 = arith.constant 0 : index
    %354 = vector.load %arg8[%c0_141, %c0_142, %c0_143] : memref<8x8x128xf32, #tpu.memory_space<vmem>>, vector<8x8x128xf32>
    tpu.vector_store %arg8[%c0_141, %c0_142, %c0_143], %353 {strides = array<i32>} : memref<8x8x128xf32, #tpu.memory_space<vmem>>, vector<8x8x128xf32>,
    return
  }
  func.func @transform_0(%arg0: i32, %arg1: i32) -> (i32, i32, i32) {
    %c0_i32 = arith.constant 0 : i32
    %c0_i32_0 = arith.constant 0 : i32
    return %arg1, %arg0, %c0_i32 : i32, i32, i32
  }
  func.func @transform_1(%arg0: i32, %arg1: i32) -> (i32, i32) {
    %c0_i32 = arith.constant 0 : i32
    %c0_i32_0 = arith.constant 0 : i32
    %c0_i32_1 = arith.constant 0 : i32
    return %c0_i32, %c0_i32_0 : i32, i32
  }
  func.func @transform_2(%arg0: i32, %arg1: i32) -> (i32, i32) {
    %c0_i32 = arith.constant 0 : i32
    %c0_i32_0 = arith.constant 0 : i32
    %c0_i32_1 = arith.constant 0 : i32
    return %c0_i32, %c0_i32_0 : i32, i32
  }
  func.func @transform_3(%arg0: i32, %arg1: i32) -> (i32, i32) {
    %c0_i32 = arith.constant 0 : i32
    %c0_i32_0 = arith.constant 0 : i32
    %c0_i32_1 = arith.constant 0 : i32
    return %c0_i32, %c0_i32_0 : i32, i32
  }
  func.func @transform_4(%arg0: i32, %arg1: i32) -> (i32, i32) {
    %c0_i32 = arith.constant 0 : i32
    %c0_i32_0 = arith.constant 0 : i32
    %c0_i32_1 = arith.constant 0 : i32
    return %c0_i32, %c0_i32_0 : i32, i32
  }
  func.func @transform_5(%arg0: i32, %arg1: i32) -> (i32, i32) {
    %c0_i32 = arith.constant 0 : i32
    %c0_i32_0 = arith.constant 0 : i32
    %c0_i32_1 = arith.constant 0 : i32
    return %c0_i32, %c0_i32_0 : i32, i32
  }
  func.func @transform_6(%arg0: i32, %arg1: i32) -> (i32, i32, i32) {
    %c0_i32 = arith.constant 0 : i32
    %c0_i32_0 = arith.constant 0 : i32
    return %arg1, %arg0, %c0_i32 : i32, i32, i32
  }
}

</mosaic_0001>

<llo_original>
// kernel: tpu_custom_call.1
$region0: #{tpu_custom_call.1}
  #allocation0 [shape = 'u32[]', space=smem, size = 0x4, offset = 0x4, fixed_abs, tag = 'smem constant byte address 0x4 - core index']
  #allocation1 [shape = 'u32[144,128]{1,0:T(1,128)}', space=vmem, size = 0x12000, scoped, tag = 'internal scratch']
  #allocation2 [shape = 'f32[8,128]{1,0:T(8,128)}', space=vmem, size = 0x1000, scoped, tag = 'scratch operand']
  #allocation3 [shape = 'f32[8,128]{1,0:T(8,128)}', space=vmem, size = 0x1000, scoped, tag = 'scratch operand']
  #allocation4 [shape = 'f32[8,8,512]{2,1,0:T(8,128)}', space=vmem, size = 0x20000, scoped, tag = 'scratch operand']
  #allocation5 [shape = 'f32[8,8,128]{2,1,0:T(8,128)}', space=vmem, size = 0x8000, scoped, tag = 'scratch operand']
  %s0 = inlined_call_operand.hbm [shape: bf16[8,8,32], index: 0, kind: input, shape index: {}]
  %s1 = inlined_call_operand.hbm [shape: bf16[32,512], index: 1, kind: input, shape index: {}]
  %s2 = inlined_call_operand.hbm [shape: bf16[128,512], index: 2, kind: input, shape index: {}]
  %s3 = inlined_call_operand.vmem [shape: f32[1,512], index: 3, kind: input, shape index: {}]
  %s4 = inlined_call_operand.hbm [shape: bf16[128,128], index: 4, kind: input, shape index: {}]
  %s5 = inlined_call_operand.vmem [shape: f32[1,128], index: 5, kind: input, shape index: {}]
  %s6 = inlined_call_operand.hbm [shape: f32[8,8,128], index: 6, kind: output, shape index: {}]
  %s7 = sld [smem:[#allocation0]]
  $region54: #{tpu_custom_call.1} parent=0
    _
  %s9 = ssub.s32 1, %s7
  %s10 = scalar_select 0, %s9, %s7
  $region1: #{tpu_custom_call.1} parent=0
    #allocation6 [shape = 'u8[16384]{0}', space=vmem, size = 0x4000, scoped, tag = 'input window, operand 0, single buffered']
    #allocation7 [shape = 's32[1]{0}', space=sflag, size = 0x4, scoped, tag = 'scoped memory for tpu_custom_call.1']
    #allocation8 [shape = 's32[1]{0}', space=sflag, size = 0x4, scoped, tag = 'scoped memory for tpu_custom_call.1']
    #allocation9 [shape = 'u8[32768]{0}', space=vmem, size = 0x8000, scoped, tag = 'input window, operand 1, single buffered']
    #allocation10 [shape = 's32[1]{0}', space=sflag, size = 0x4, scoped, tag = 'scoped memory for tpu_custom_call.1']
    #allocation11 [shape = 'u8[131072]{0}', space=vmem, size = 0x20000, scoped, tag = 'input window, operand 2, single buffered']
    #allocation12 [shape = 'u8[32768]{0}', space=vmem, size = 0x8000, scoped, tag = 'input window, operand 4, single buffered']
    #allocation13 [shape = 's32[1]{0}', space=sflag, size = 0x4, scoped, tag = 'scoped memory for tpu_custom_call.1']
    #allocation14 [shape = 'u8[32768]{0}', space=vmem, size = 0x8000, scoped, tag = 'output window, operand 0, single buffered']
    %11 = vsyncpa [#allocation7], 0
    %12 = vsyncpa [#allocation10], 0
    %13 = vsyncpa [#allocation13], 0
    %14 = vsyncpa [#allocation8], 0
    // Predicated region
    $region2: #{tpu_custom_call.1} parent=1 // pred_check
      _
    $region3: #{tpu_custom_call.1} parent=1 // pred_check_branch
      %16 = sbr.rel (0) target = $region5
    $region4: #{tpu_custom_call.1} parent=1 // pred_region
      %s18 = ssub.s32 512, 512
      %19 = vsyncadd [#allocation7], %s18
      %s20 = sshll.u32 [#allocation6], 4
      %s21 = int_to_ptr.vmem [resolvable:$true] %s20
      %26 = dma.hbm_to_vmem [thread:$0]  %s0, 512, %s21, [#allocation7], 64, 64, 4
    $region5: #{tpu_custom_call.1} parent=1 // pred_fallthru
      _
    // Predicated region
    $region6: #{tpu_custom_call.1} parent=1 // pred_check
      _
    $region7: #{tpu_custom_call.1} parent=1 // pred_check_branch
      %28 = sbr.rel (0) target = $region9
    $region8: #{tpu_custom_call.1} parent=1 // pred_region
      %s30 = ssub.s32 1024, 1024
      %31 = vsyncadd [#allocation10], %s30
      %s32 = sshll.u32 [#allocation9], 4
      %s33 = int_to_ptr.vmem [resolvable:$true] %s32
      %38 = dma.hbm_to_vmem [thread:$0]  %s1, 1024, %s33, [#allocation10], 256, 256, 16
    $region9: #{tpu_custom_call.1} parent=1 // pred_fallthru
      _
    // Predicated region
    $region10: #{tpu_custom_call.1} parent=1 // pred_check
      _
    $region11: #{tpu_custom_call.1} parent=1 // pred_check_branch
      %40 = sbr.rel (0) target = $region13
    $region12: #{tpu_custom_call.1} parent=1 // pred_region
      %s42 = ssub.s32 4096, 4096
      %43 = vsyncadd [#allocation10], %s42
      %s44 = sshll.u32 [#allocation11], 4
      %s45 = int_to_ptr.vmem [resolvable:$true] %s44
      %50 = dma.hbm_to_vmem [thread:$0]  %s2, 4096, %s45, [#allocation10], 256, 256, 16
    $region13: #{tpu_custom_call.1} parent=1 // pred_fallthru
      _
    // Predicated region
    $region14: #{tpu_custom_call.1} parent=1 // pred_check
      _
    $region15: #{tpu_custom_call.1} parent=1 // pred_check_branch
      %52 = sbr.rel (0) target = $region17
    $region16: #{tpu_custom_call.1} parent=1 // pred_region
      _
    $region17: #{tpu_custom_call.1} parent=1 // pred_fallthru
      _
    // Predicated region
    $region18: #{tpu_custom_call.1} parent=1 // pred_check
      _
    $region19: #{tpu_custom_call.1} parent=1 // pred_check_branch
      %54 = sbr.rel (0) target = $region21
    $region20: #{tpu_custom_call.1} parent=1 // pred_region
      %s56 = ssub.s32 1024, 1024
      %57 = vsyncadd [#allocation13], %s56
      %s58 = sshll.u32 [#allocation12], 4
      %s59 = int_to_ptr.vmem [resolvable:$true] %s58
      %64 = dma.hbm_to_vmem [thread:$0]  %s4, 1024, %s59, [#allocation13], 64, 64, 4
    $region21: #{tpu_custom_call.1} parent=1 // pred_fallthru
      _
    // Predicated region
    $region22: #{tpu_custom_call.1} parent=1 // pred_check
      _
    $region23: #{tpu_custom_call.1} parent=1 // pred_check_branch
      %66 = sbr.rel (0) target = $region25
    $region24: #{tpu_custom_call.1} parent=1 // pred_region
      _
    $region25: #{tpu_custom_call.1} parent=1 // pred_fallthru
      _
    // Predicated region
    $region26: #{tpu_custom_call.1} parent=1 // pred_check
      _
    $region27: #{tpu_custom_call.1} parent=1 // pred_check_branch
      %68 = sbr.rel (0) target = $region29
    $region28: #{tpu_custom_call.1} parent=1 // pred_region
      %69 = dma.done [#allocation7], 512
    $region29: #{tpu_custom_call.1} parent=1 // pred_fallthru
      _
    // Predicated region
    $region30: #{tpu_custom_call.1} parent=1 // pred_check
      _
    $region31: #{tpu_custom_call.1} parent=1 // pred_check_branch
      %71 = sbr.rel (0) target = $region33
    $region32: #{tpu_custom_call.1} parent=1 // pred_region
      %72 = dma.done [#allocation10], 1024
    $region33: #{tpu_custom_call.1} parent=1 // pred_fallthru
      _
    // Predicated region
    $region34: #{tpu_custom_call.1} parent=1 // pred_check
      _
    $region35: #{tpu_custom_call.1} parent=1 // pred_check_branch
      %74 = sbr.rel (0) target = $region37
    $region36: #{tpu_custom_call.1} parent=1 // pred_region
      %75 = dma.done [#allocation10], 4096
    $region37: #{tpu_custom_call.1} parent=1 // pred_fallthru
      _
    // Predicated region
    $region38: #{tpu_custom_call.1} parent=1 // pred_check
      _
    $region39: #{tpu_custom_call.1} parent=1 // pred_check_branch
      %77 = sbr.rel (0) target = $region41
    $region40: #{tpu_custom_call.1} parent=1 // pred_region
      %78 = dma.done [#allocation13], 1024
    $region41: #{tpu_custom_call.1} parent=1 // pred_fallthru
      _
    %p80 = scmp.eq.s32.totalorder 0, 0
    // Predicated region
    $region42: #{tpu_custom_call.1} parent=1 // pred_check
      %p81 = pneg %p80
    $region43: #{tpu_custom_call.1} parent=1 // pred_check_branch
      %83 = sbr.rel (%p81) target = $region45
    $region44: #{tpu_custom_call.1} parent=1 // pred_region
      %84 = vst [vmem:[#allocation2] sm:$0xff] 0.0
      %85 = vst [vmem:[#allocation3] sm:$0xff] 0.0
    $region45: #{tpu_custom_call.1} parent=1 // pred_fallthru
      _
    %v86 = vld [vmem:[#allocation6] sm:$0xf]
    %v87 = vld [vmem:[#allocation6 + $0x4] sm:$0xf]
    %v88 = vld [vmem:[#allocation6 + $0x8] sm:$0xf]
    %v89 = vld [vmem:[#allocation6 + $0xc] sm:$0xf]
    %v90 = vld [vmem:[#allocation6 + $0x10] sm:$0xf]
    %v91 = vld [vmem:[#allocation6 + $0x14] sm:$0xf]
    %v92 = vld [vmem:[#allocation6 + $0x18] sm:$0xf]
    %v93 = vld [vmem:[#allocation6 + $0x1c] sm:$0xf]
    %v94 = vld [vmem:[#allocation9] sm:$0xff]
    %v95 = vld [vmem:[#allocation9 + $0x8] sm:$0xff]
    %v96 = vld [vmem:[#allocation9 + $0x10] sm:$0xff]
    %v97 = vld [vmem:[#allocation9 + $0x18] sm:$0xff]
    %v98 = vld [vmem:[#allocation9 + $0x20] sm:$0xff]
    %v99 = vld [vmem:[#allocation9 + $0x28] sm:$0xff]
    %v100 = vld [vmem:[#allocation9 + $0x30] sm:$0xff]
    %v101 = vld [vmem:[#allocation9 + $0x38] sm:$0xff]
    %v102 = vld [vmem:[%s3] sm:$0xf]
    %v104 = vlaneseq
    %v105 = vshrl.u32 %v104, 7
    %v106 = vsub.s32 0, %v105
    %v107 = vrot.slane %v102, %v106
    %v108 = vlaneseq
    %v109 = vshrl.u32 %v108, 7
    %v110 = vsub.s32 1, %v109
    %v111 = vrot.slane %v102, %v110
    %v112 = vlaneseq
    %v113 = vshrl.u32 %v112, 7
    %v114 = vsub.s32 2, %v113
    %v115 = vrot.slane %v102, %v114
    %v116 = vlaneseq
    %v117 = vshrl.u32 %v116, 7
    %v118 = vsub.s32 3, %v117
    %v119 = vrot.slane %v102, %v118
    %v132 = vunpack.c.l.b16 %v86
    %v133 = vunpack.c.l.b16 %v87
    %v134 = vunpack.c.l.b16 %v88
    %v135 = vunpack.c.l.b16 %v89
    %v136 = vunpack.c.l.b16 %v90
    %v137 = vunpack.c.l.b16 %v91
    %v138 = vunpack.c.l.b16 %v92
    %v139 = vunpack.c.l.b16 %v93
    %v140 = vpack.c.b16 %v133, %v132
    %v141 = vpack.c.b16 %v135, %v134
    %v142 = vpack.c.b16 %v137, %v136
    %v143 = vpack.c.b16 %v139, %v138
    %v152 = vunpack.c.l.b16 %v94
    %v153 = vunpack.c.h.b16 %v94
    %v154 = vunpack.c.l.b16 %v95
    %v155 = vunpack.c.h.b16 %v95
    %v156 = vunpack.c.l.b16 %v96
    %v157 = vunpack.c.h.b16 %v96
    %v158 = vunpack.c.l.b16 %v97
    %v159 = vunpack.c.h.b16 %v97
    %v160 = vunpack.c.l.b16 %v98
    %v161 = vunpack.c.h.b16 %v98
    %v162 = vunpack.c.l.b16 %v99
    %v163 = vunpack.c.h.b16 %v99
    %v164 = vunpack.c.l.b16 %v100
    %v165 = vunpack.c.h.b16 %v100
    %v166 = vunpack.c.l.b16 %v101
    %v167 = vunpack.c.h.b16 %v101
    %v168 = vpack.c.b16 %v156, %v152
    %v169 = vpack.c.b16 %v157, %v153
    %v170 = vpack.c.b16 %v158, %v154
    %v171 = vpack.c.b16 %v159, %v155
    %v172 = vpack.c.b16 %v164, %v160
    %v173 = vpack.c.b16 %v165, %v161
    %v174 = vpack.c.b16 %v166, %v162
    %v175 = vpack.c.b16 %v167, %v163
    %vm184 = vcmask 261120
    %v186 = vsel %vm184, %v140, 0
    %v189 = vsel %vm184, %v141, 0
    %v192 = vsel %vm184, %v142, 0
    %v195 = vsel %vm184, %v143, 0
    %197 = vmatprep.subr.bf16.mxu0 %v169
    %198 = vmatpush1.bf16.msra.mxu0 %v168
    %199 = vmatprep.subr.bf16.mxu0 %v173
    %200 = vmatpush1.bf16.msra.mxu0 %v172
    %201 = vmatprep.subr.bf16.mxu0 0
    %202 = vmatpush1.bf16.msra.mxu0 0
    %203 = vmatprep.subr.bf16.mxu0 0
    %204 = vmatpush1.bf16.msra.mxu0 0
    %205 = vmatprep.subr.bf16.mxu0 0
    %206 = vmatpush1.bf16.msra.mxu0 0
    %207 = vmatprep.subr.bf16.mxu0 0
    %208 = vmatpush1.bf16.msra.mxu0 0
    %209 = vmatprep.subr.bf16.mxu0 0
    %210 = vmatpush1.bf16.msra.mxu0 0
    %211 = vmatprep.subr.bf16.mxu0 0
    %212 = vmatpush1.bf16.msra.mxu0 0
    %213 = vmatprep.subr.bf16.mxu0 0
    %214 = vmatpush1.bf16.msra.mxu0 0
    %215 = vmatprep.subr.bf16.mxu0 0
    %216 = vmatpush1.bf16.msra.mxu0 0
    %217 = vmatprep.subr.bf16.mxu0 0
    %218 = vmatpush1.bf16.msra.mxu0 0
    %219 = vmatprep.subr.bf16.mxu0 0
    %220 = vmatpush1.bf16.msra.mxu0 0
    %221 = vmatprep.subr.bf16.mxu0 0
    %222 = vmatpush1.bf16.msra.mxu0 0
    %223 = vmatprep.subr.bf16.mxu0 0
    %224 = vmatpush1.bf16.msra.mxu0 0
    %225 = vmatprep.subr.bf16.mxu0 0
    %226 = vmatpush1.bf16.msra.mxu0 0
    %227 = vmatprep.subr.bf16.mxu0 0
    %228 = vmatpush1.bf16.msra.mxu0 0
    %229 = vmatprep.mubr.bf16.mxu0 0
    %230 = vmatmul.mubr.bf16.gmra.mrb[0].mxu0 %v186
    %v231 = vpop.f32.mrb[0].mxu0
    %v232 = vadd.f32 %v107, %v231
    %v233 = vpop.f32.mrb[0].mxu0
    %v234 = vadd.f32 %v111, %v233
    %v235 = vpop.f32.mrb[0].mxu0
    %v236 = vadd.f32 %v107, %v235
    %v237 = vpop.f32.mrb[0].mxu0
    %v238 = vadd.f32 %v111, %v237
    %239 = vmatprep.mubr.bf16.mxu0 0
    %240 = vmatmul.mubr.bf16.gmra.mrb[0].mxu0 %v189
    %v241 = vpop.f32.mrb[0].mxu0
    %v242 = vadd.f32 %v107, %v241
    %v243 = vpop.f32.mrb[0].mxu0
    %v244 = vadd.f32 %v111, %v243
    %v245 = vpop.f32.mrb[0].mxu0
    %v246 = vadd.f32 %v107, %v245
    %v247 = vpop.f32.mrb[0].mxu0
    %v248 = vadd.f32 %v111, %v247
    %249 = vmatprep.mubr.bf16.mxu0 0
    %250 = vmatmul.mubr.bf16.gmra.mrb[0].mxu0 %v192
    %v251 = vpop.f32.mrb[0].mxu0
    %v252 = vadd.f32 %v107, %v251
    %v253 = vpop.f32.mrb[0].mxu0
    %v254 = vadd.f32 %v111, %v253
    %v255 = vpop.f32.mrb[0].mxu0
    %v256 = vadd.f32 %v107, %v255
    %v257 = vpop.f32.mrb[0].mxu0
    %v258 = vadd.f32 %v111, %v257
    %259 = vmatprep.mubr.bf16.mxu0 0
    %260 = vmatmul.mubr.bf16.gmra.mrb[0].mxu0 %v195
    %v261 = vpop.f32.mrb[0].mxu0
    %v262 = vadd.f32 %v107, %v261
    %v263 = vpop.f32.mrb[0].mxu0
    %v264 = vadd.f32 %v111, %v263
    %v265 = vpop.f32.mrb[0].mxu0
    %v266 = vadd.f32 %v107, %v265
    %v267 = vpop.f32.mrb[0].mxu0
    %v268 = vadd.f32 %v111, %v267
    %269 = vdwg.mxu0
    %270 = vmatprep.subr.bf16.mxu0 %v171
    %271 = vmatpush1.bf16.msra.mxu0 %v170
    %272 = vmatprep.subr.bf16.mxu0 %v175
    %273 = vmatpush1.bf16.msra.mxu0 %v174
    %274 = vmatprep.subr.bf16.mxu0 0
    %275 = vmatpush1.bf16.msra.mxu0 0
    %276 = vmatprep.subr.bf16.mxu0 0
    %277 = vmatpush1.bf16.msra.mxu0 0
    %278 = vmatprep.subr.bf16.mxu0 0
    %279 = vmatpush1.bf16.msra.mxu0 0
    %280 = vmatprep.subr.bf16.mxu0 0
    %281 = vmatpush1.bf16.msra.mxu0 0
    %282 = vmatprep.subr.bf16.mxu0 0
    %283 = vmatpush1.bf16.msra.mxu0 0
    %284 = vmatprep.subr.bf16.mxu0 0
    %285 = vmatpush1.bf16.msra.mxu0 0
    %286 = vmatprep.subr.bf16.mxu0 0
    %287 = vmatpush1.bf16.msra.mxu0 0
    %288 = vmatprep.subr.bf16.mxu0 0
    %289 = vmatpush1.bf16.msra.mxu0 0
    %290 = vmatprep.subr.bf16.mxu0 0
    %291 = vmatpush1.bf16.msra.mxu0 0
    %292 = vmatprep.subr.bf16.mxu0 0
    %293 = vmatpush1.bf16.msra.mxu0 0
    %294 = vmatprep.subr.bf16.mxu0 0
    %295 = vmatpush1.bf16.msra.mxu0 0
    %296 = vmatprep.subr.bf16.mxu0 0
    %297 = vmatpush1.bf16.msra.mxu0 0
    %298 = vmatprep.subr.bf16.mxu0 0
    %299 = vmatpush1.bf16.msra.mxu0 0
    %300 = vmatprep.subr.bf16.mxu0 0
    %301 = vmatpush1.bf16.msra.mxu0 0
    %302 = vmatprep.mubr.bf16.mxu0 0
    %303 = vmatmul.mubr.bf16.gmra.mrb[0].mxu0 %v186
    %v304 = vpop.f32.mrb[0].mxu0
    %v305 = vadd.f32 %v115, %v304
    %v306 = vpop.f32.mrb[0].mxu0
    %v307 = vadd.f32 %v119, %v306
    %v308 = vpop.f32.mrb[0].mxu0
    %v309 = vadd.f32 %v115, %v308
    %v310 = vpop.f32.mrb[0].mxu0
    %v311 = vadd.f32 %v119, %v310
    %312 = vmatprep.mubr.bf16.mxu0 0
    %313 = vmatmul.mubr.bf16.gmra.mrb[0].mxu0 %v189
    %v314 = vpop.f32.mrb[0].mxu0
    %v315 = vadd.f32 %v115, %v314
    %v316 = vpop.f32.mrb[0].mxu0
    %v317 = vadd.f32 %v119, %v316
    %v318 = vpop.f32.mrb[0].mxu0
    %v319 = vadd.f32 %v115, %v318
    %v320 = vpop.f32.mrb[0].mxu0
    %v321 = vadd.f32 %v119, %v320
    %322 = vmatprep.mubr.bf16.mxu0 0
    %323 = vmatmul.mubr.bf16.gmra.mrb[0].mxu0 %v192
    %v324 = vpop.f32.mrb[0].mxu0
    %v325 = vadd.f32 %v115, %v324
    %v326 = vpop.f32.mrb[0].mxu0
    %v327 = vadd.f32 %v119, %v326
    %v328 = vpop.f32.mrb[0].mxu0
    %v329 = vadd.f32 %v115, %v328
    %v330 = vpop.f32.mrb[0].mxu0
    %v331 = vadd.f32 %v119, %v330
    %332 = vmatprep.mubr.bf16.mxu0 0
    %333 = vmatmul.mubr.bf16.gmra.mrb[0].mxu0 %v195
    %v334 = vpop.f32.mrb[0].mxu0
    %v335 = vadd.f32 %v115, %v334
    %v336 = vpop.f32.mrb[0].mxu0
    %v337 = vadd.f32 %v119, %v336
    %v338 = vpop.f32.mrb[0].mxu0
    %v339 = vadd.f32 %v115, %v338
    %v340 = vpop.f32.mrb[0].mxu0
    %v341 = vadd.f32 %v119, %v340
    %342 = vdwg.mxu0
    %343 = vst [vmem:[#allocation4] sm:$0xff] %v232
    %344 = vst [vmem:[#allocation4 + $0x8] sm:$0xff] %v234
    %345 = vst [vmem:[#allocation4 + $0x10] sm:$0xff] %v305
    %346 = vst [vmem:[#allocation4 + $0x18] sm:$0xff] %v307
    %347 = vst [vmem:[#allocation4 + $0x20] sm:$0xff] %v236
    %348 = vst [vmem:[#allocation4 + $0x28] sm:$0xff] %v238
    %349 = vst [vmem:[#allocation4 + $0x30] sm:$0xff] %v309
    %350 = vst [vmem:[#allocation4 + $0x38] sm:$0xff] %v311
    %351 = vst [vmem:[#allocation4 + $0x40] sm:$0xff] %v242
    %352 = vst [vmem:[#allocation4 + $0x48] sm:$0xff] %v244
    %353 = vst [vmem:[#allocation4 + $0x50] sm:$0xff] %v315
    %354 = vst [vmem:[#allocation4 + $0x58] sm:$0xff] %v317
    %355 = vst [vmem:[#allocation4 + $0x60] sm:$0xff] %v246
    %356 = vst [vmem:[#allocation4 + $0x68] sm:$0xff] %v248
    %357 = vst [vmem:[#allocation4 + $0x70] sm:$0xff] %v319
    %358 = vst [vmem:[#allocation4 + $0x78] sm:$0xff] %v321
    %359 = vst [vmem:[#allocation4 + $0x80] sm:$0xff] %v252
    %360 = vst [vmem:[#allocation4 + $0x88] sm:$0xff] %v254
    %361 = vst [vmem:[#allocation4 + $0x90] sm:$0xff] %v325
    %362 = vst [vmem:[#allocation4 + $0x98] sm:$0xff] %v327
    %363 = vst [vmem:[#allocation4 + $0xa0] sm:$0xff] %v256
    %364 = vst [vmem:[#allocation4 + $0xa8] sm:$0xff] %v258
    %365 = vst [vmem:[#allocation4 + $0xb0] sm:$0xff] %v329
    %366 = vst [vmem:[#allocation4 + $0xb8] sm:$0xff] %v331
    %367 = vst [vmem:[#allocation4 + $0xc0] sm:$0xff] %v262
    %368 = vst [vmem:[#allocation4 + $0xc8] sm:$0xff] %v264
    %369 = vst [vmem:[#allocation4 + $0xd0] sm:$0xff] %v335
    %370 = vst [vmem:[#allocation4 + $0xd8] sm:$0xff] %v337
    %371 = vst [vmem:[#allocation4 + $0xe0] sm:$0xff] %v266
    %372 = vst [vmem:[#allocation4 + $0xe8] sm:$0xff] %v268
    %373 = vst [vmem:[#allocation4 + $0xf0] sm:$0xff] %v339
    %374 = vst [vmem:[#allocation4 + $0xf8] sm:$0xff] %v341
    %v375 = vld [vmem:[#allocation11] sm:$0xff]
    %v376 = vld [vmem:[#allocation11 + $0x8] sm:$0xff]
    %v377 = vld [vmem:[#allocation11 + $0x10] sm:$0xff]
    %v378 = vld [vmem:[#allocation11 + $0x18] sm:$0xff]
    %v379 = vld [vmem:[#allocation11 + $0x20] sm:$0xff]
    %v380 = vld [vmem:[#allocation11 + $0x28] sm:$0xff]
    %v381 = vld [vmem:[#allocation11 + $0x30] sm:$0xff]
    %v382 = vld [vmem:[#allocation11 + $0x38] sm:$0xff]
    %v383 = vld [vmem:[#allocation11 + $0x40] sm:$0xff]
    %v384 = vld [vmem:[#allocation11 + $0x48] sm:$0xff]
    %v385 = vld [vmem:[#allocation11 + $0x50] sm:$0xff]
    %v386 = vld [vmem:[#allocation11 + $0x58] sm:$0xff]
    %v387 = vld [vmem:[#allocation11 + $0x60] sm:$0xff]
    %v388 = vld [vmem:[#allocation11 + $0x68] sm:$0xff]
    %v389 = vld [vmem:[#allocation11 + $0x70] sm:$0xff]
    %v390 = vld [vmem:[#allocation11 + $0x78] sm:$0xff]
    %v391 = vld [vmem:[#allocation11 + $0x80] sm:$0xff]
    %v392 = vld [vmem:[#allocation11 + $0x88] sm:$0xff]
    %v393 = vld [vmem:[#allocation11 + $0x90] sm:$0xff]
    %v394 = vld [vmem:[#allocation11 + $0x98] sm:$0xff]
    %v395 = vld [vmem:[#allocation11 + $0xa0] sm:$0xff]
    %v396 = vld [vmem:[#allocation11 + $0xa8] sm:$0xff]
    %v397 = vld [vmem:[#allocation11 + $0xb0] sm:$0xff]
    %v398 = vld [vmem:[#allocation11 + $0xb8] sm:$0xff]
    %v399 = vld [vmem:[#allocation11 + $0xc0] sm:$0xff]
    %v400 = vld [vmem:[#allocation11 + $0xc8] sm:$0xff]
    %v401 = vld [vmem:[#allocation11 + $0xd0] sm:$0xff]
    %v402 = vld [vmem:[#allocation11 + $0xd8] sm:$0xff]
    %v403 = vld [vmem:[#allocation11 + $0xe0] sm:$0xff]
    %v404 = vld [vmem:[#allocation11 + $0xe8] sm:$0xff]
    %v405 = vld [vmem:[#allocation11 + $0xf0] sm:$0xff]
    %v406 = vld [vmem:[#allocation11 + $0xf8] sm:$0xff]
    %v407 = vld [vmem:[#allocation2] sm:$0xff]
    %v408 = vld [vmem:[#allocation3] sm:$0xff]
    %v409 = vld [vmem:[#allocation4] sm:$0xff]
    %v410 = vld [vmem:[#allocation4 + $0x8] sm:$0xff]
    %v411 = vld [vmem:[#allocation4 + $0x10] sm:$0xff]
    %v412 = vld [vmem:[#allocation4 + $0x18] sm:$0xff]
    %v413 = vpack.c.bf16 %v407, %v407
    %v446 = vunpack.c.l.b16 %v375
    %v447 = vunpack.c.h.b16 %v375
    %v448 = vunpack.c.l.b16 %v376
    %v449 = vunpack.c.h.b16 %v376
    %v450 = vunpack.c.l.b16 %v377
    %v451 = vunpack.c.h.b16 %v377
    %v452 = vunpack.c.l.b16 %v378
    %v453 = vunpack.c.h.b16 %v378
    %v454 = vunpack.c.l.b16 %v379
    %v455 = vunpack.c.h.b16 %v379
    %v456 = vunpack.c.l.b16 %v380
    %v457 = vunpack.c.h.b16 %v380
    %v458 = vunpack.c.l.b16 %v381
    %v459 = vunpack.c.h.b16 %v381
    %v460 = vunpack.c.l.b16 %v382
    %v461 = vunpack.c.h.b16 %v382
    %v462 = vunpack.c.l.b16 %v383
    %v463 = vunpack.c.h.b16 %v383
    %v464 = vunpack.c.l.b16 %v384
    %v465 = vunpack.c.h.b16 %v384
    %v466 = vunpack.c.l.b16 %v385
    %v467 = vunpack.c.h.b16 %v385
    %v468 = vunpack.c.l.b16 %v386
    %v469 = vunpack.c.h.b16 %v386
    %v470 = vunpack.c.l.b16 %v387
    %v471 = vunpack.c.h.b16 %v387
    %v472 = vunpack.c.l.b16 %v388
    %v473 = vunpack.c.h.b16 %v388
    %v474 = vunpack.c.l.b16 %v389
    %v475 = vunpack.c.h.b16 %v389
    %v476 = vunpack.c.l.b16 %v390
    %v477 = vunpack.c.h.b16 %v390
    %v478 = vunpack.c.l.b16 %v391
    %v479 = vunpack.c.h.b16 %v391
    %v480 = vunpack.c.l.b16 %v392
    %v481 = vunpack.c.h.b16 %v392
    %v482 = vunpack.c.l.b16 %v393
    %v483 = vunpack.c.h.b16 %v393
    %v484 = vunpack.c.l.b16 %v394
    %v485 = vunpack.c.h.b16 %v394
    %v486 = vunpack.c.l.b16 %v395
    %v487 = vunpack.c.h.b16 %v395
    %v488 = vunpack.c.l.b16 %v396
    %v489 = vunpack.c.h.b16 %v396
    %v490 = vunpack.c.l.b16 %v397
    %v491 = vunpack.c.h.b16 %v397
    %v492 = vunpack.c.l.b16 %v398
    %v493 = vunpack.c.h.b16 %v398
    %v494 = vunpack.c.l.b16 %v399
    %v495 = vunpack.c.h.b16 %v399
    %v496 = vunpack.c.l.b16 %v400
    %v497 = vunpack.c.h.b16 %v400
    %v498 = vunpack.c.l.b16 %v401
    %v499 = vunpack.c.h.b16 %v401
    %v500 = vunpack.c.l.b16 %v402
    %v501 = vunpack.c.h.b16 %v402
    %v502 = vunpack.c.l.b16 %v403
    %v503 = vunpack.c.h.b16 %v403
    %v504 = vunpack.c.l.b16 %v404
    %v505 = vunpack.c.h.b16 %v404
    %v506 = vunpack.c.l.b16 %v405
    %v507 = vunpack.c.h.b16 %v405
    %v508 = vunpack.c.l.b16 %v406
    %v509 = vunpack.c.h.b16 %v406
    %v510 = vpack.c.b16 %v450, %v446
    %v511 = vpack.c.b16 %v451, %v447
    %v512 = vpack.c.b16 %v452, %v448
    %v513 = vpack.c.b16 %v453, %v449
    %v514 = vpack.c.b16 %v458, %v454
    %v515 = vpack.c.b16 %v459, %v455
    %v516 = vpack.c.b16 %v460, %v456
    %v517 = vpack.c.b16 %v461, %v457
    %v518 = vpack.c.b16 %v466, %v462
    %v519 = vpack.c.b16 %v467, %v463
    %v520 = vpack.c.b16 %v468, %v464
    %v521 = vpack.c.b16 %v469, %v465
    %v522 = vpack.c.b16 %v474, %v470
    %v523 = vpack.c.b16 %v475, %v471
    %v524 = vpack.c.b16 %v476, %v472
    %v525 = vpack.c.b16 %v477, %v473
    %v526 = vpack.c.b16 %v482, %v478
    %v527 = vpack.c.b16 %v483, %v479
    %v528 = vpack.c.b16 %v484, %v480
    %v529 = vpack.c.b16 %v485, %v481
    %v530 = vpack.c.b16 %v490, %v486
    %v531 = vpack.c.b16 %v491, %v487
    %v532 = vpack.c.b16 %v492, %v488
    %v533 = vpack.c.b16 %v493, %v489
    %v534 = vpack.c.b16 %v498, %v494
    %v535 = vpack.c.b16 %v499, %v495
    %v536 = vpack.c.b16 %v500, %v496
    %v537 = vpack.c.b16 %v501, %v497
    %v538 = vpack.c.b16 %v506, %v502
    %v539 = vpack.c.b16 %v507, %v503
    %v540 = vpack.c.b16 %v508, %v504
    %v541 = vpack.c.b16 %v509, %v505
    %574 = vmatprep.subr.bf16.mxu0 %v511
    %575 = vmatpush1.bf16.msra.mxu0 %v510
    %576 = vmatprep.subr.bf16.mxu0 %v515
    %577 = vmatpush1.bf16.msra.mxu0 %v514
    %578 = vmatprep.subr.bf16.mxu0 %v519
    %579 = vmatpush1.bf16.msra.mxu0 %v518
    %580 = vmatprep.subr.bf16.mxu0 %v523
    %581 = vmatpush1.bf16.msra.mxu0 %v522
    %582 = vmatprep.subr.bf16.mxu0 %v527
    %583 = vmatpush1.bf16.msra.mxu0 %v526
    %584 = vmatprep.subr.bf16.mxu0 %v531
    %585 = vmatpush1.bf16.msra.mxu0 %v530
    %586 = vmatprep.subr.bf16.mxu0 %v535
    %587 = vmatpush1.bf16.msra.mxu0 %v534
    %588 = vmatprep.subr.bf16.mxu0 %v539
    %589 = vmatpush1.bf16.msra.mxu0 %v538
    %590 = vmatprep.subr.bf16.mxu0 0
    %591 = vmatpush1.bf16.msra.mxu0 0
    %592 = vmatprep.subr.bf16.mxu0 0
    %593 = vmatpush1.bf16.msra.mxu0 0
    %594 = vmatprep.subr.bf16.mxu0 0
    %595 = vmatpush1.bf16.msra.mxu0 0
    %596 = vmatprep.subr.bf16.mxu0 0
    %597 = vmatpush1.bf16.msra.mxu0 0
    %598 = vmatprep.subr.bf16.mxu0 0
    %599 = vmatpush1.bf16.msra.mxu0 0
    %600 = vmatprep.subr.bf16.mxu0 0
    %601 = vmatpush1.bf16.msra.mxu0 0
    %602 = vmatprep.subr.bf16.mxu0 0
    %603 = vmatpush1.bf16.msra.mxu0 0
    %604 = vmatprep.subr.bf16.mxu0 0
    %605 = vmatpush1.bf16.msra.mxu0 0
    %606 = vmatprep.mubr.bf16.mxu0 0
    %607 = vmatmul.mubr.bf16.gmra.mrb[0].mxu0 %v413
    %v608 = vpop.f32.mrb[0].mxu0
    %v609 = vadd.f32 0.0, %v608
    %v610 = vpop.f32.mrb[0].mxu0
    %v611 = vadd.f32 0.0, %v610
    %v612 = vpop.f32.mrb[0].mxu0
    %v613 = vpop.f32.mrb[0].mxu0
    %614 = vdwg.mxu0
    %615 = vmatprep.subr.bf16.mxu0 %v513
    %616 = vmatpush1.bf16.msra.mxu0 %v512
    %617 = vmatprep.subr.bf16.mxu0 %v517
    %618 = vmatpush1.bf16.msra.mxu0 %v516
    %619 = vmatprep.subr.bf16.mxu0 %v521
    %620 = vmatpush1.bf16.msra.mxu0 %v520
    %621 = vmatprep.subr.bf16.mxu0 %v525
    %622 = vmatpush1.bf16.msra.mxu0 %v524
    %623 = vmatprep.subr.bf16.mxu0 %v529
    %624 = vmatpush1.bf16.msra.mxu0 %v528
    %625 = vmatprep.subr.bf16.mxu0 %v533
    %626 = vmatpush1.bf16.msra.mxu0 %v532
    %627 = vmatprep.subr.bf16.mxu0 %v537
    %628 = vmatpush1.bf16.msra.mxu0 %v536
    %629 = vmatprep.subr.bf16.mxu0 %v541
    %630 = vmatpush1.bf16.msra.mxu0 %v540
    %631 = vmatprep.subr.bf16.mxu0 0
    %632 = vmatpush1.bf16.msra.mxu0 0
    %633 = vmatprep.subr.bf16.mxu0 0
    %634 = vmatpush1.bf16.msra.mxu0 0
    %635 = vmatprep.subr.bf16.mxu0 0
    %636 = vmatpush1.bf16.msra.mxu0 0
    %637 = vmatprep.subr.bf16.mxu0 0
    %638 = vmatpush1.bf16.msra.mxu0 0
    %639 = vmatprep.subr.bf16.mxu0 0
    %640 = vmatpush1.bf16.msra.mxu0 0
    %641 = vmatprep.subr.bf16.mxu0 0
    %642 = vmatpush1.bf16.msra.mxu0 0
    %643 = vmatprep.subr.bf16.mxu0 0
    %644 = vmatpush1.bf16.msra.mxu0 0
    %645 = vmatprep.subr.bf16.mxu0 0
    %646 = vmatpush1.bf16.msra.mxu0 0
    %647 = vmatprep.mubr.bf16.mxu0 0
    %648 = vmatmul.mubr.bf16.gmra.mrb[0].mxu0 %v413
    %v649 = vpop.f32.mrb[0].mxu0
    %v650 = vadd.f32 0.0, %v649
    %v651 = vpop.f32.mrb[0].mxu0
    %v652 = vadd.f32 0.0, %v651
    %v653 = vpop.f32.mrb[0].mxu0
    %v654 = vpop.f32.mrb[0].mxu0
    %655 = vdwg.mxu0
    %v656 = vadd.f32 %v409, %v609
    %v657 = vadd.f32 %v410, %v611
    %v658 = vadd.f32 %v411, %v650
    %v659 = vadd.f32 %v412, %v652
    %v660 = vmul.f32 %v656, 0.5
    %v661 = vtanh.pop %v660
    %v662 = vmul.f32 %v661, 0.5
    %v663 = vadd.f32 %v662, 0.5
    %v664 = vmul.f32 %v657, 0.5
    %v665 = vtanh.pop %v664
    %v666 = vmul.f32 %v665, 0.5
    %v667 = vadd.f32 %v666, 0.5
    %v668 = vtanh.pop %v658
    %v669 = vmul.f32 %v659, 0.5
    %v670 = vtanh.pop %v669
    %v671 = vmul.f32 %v670, 0.5
    %v672 = vadd.f32 %v671, 0.5
    %v673 = vmul.f32 %v667, %v408
    %v674 = vmul.f32 %v663, %v668
    %v675 = vadd.f32 %v673, %v674
    %v676 = vtanh.pop %v675
    %v677 = vmul.f32 %v672, %v676
    %678 = vst [vmem:[#allocation5] sm:$0xff] %v677
    %s679 = scalar_lea.vmem [#allocation4], 32
    %v680 = vld [vmem:[%s679] sm:$0xff]
    %v681 = vld [vmem:[%s679 + $0x8] sm:$0xff]
    %v682 = vld [vmem:[%s679 + $0x10] sm:$0xff]
    %v683 = vld [vmem:[%s679 + $0x18] sm:$0xff]
    %v684 = vpack.c.bf16 %v677, %v677
    %685 = vmatprep.subr.bf16.mxu0 %v511
    %686 = vmatpush1.bf16.msra.mxu0 %v510
    %687 = vmatprep.subr.bf16.mxu0 %v515
    %688 = vmatpush1.bf16.msra.mxu0 %v514
    %689 = vmatprep.subr.bf16.mxu0 %v519
    %690 = vmatpush1.bf16.msra.mxu0 %v518
    %691 = vmatprep.subr.bf16.mxu0 %v523
    %692 = vmatpush1.bf16.msra.mxu0 %v522
    %693 = vmatprep.subr.bf16.mxu0 %v527
    %694 = vmatpush1.bf16.msra.mxu0 %v526
    %695 = vmatprep.subr.bf16.mxu0 %v531
    %696 = vmatpush1.bf16.msra.mxu0 %v530
    %697 = vmatprep.subr.bf16.mxu0 %v535
    %698 = vmatpush1.bf16.msra.mxu0 %v534
    %699 = vmatprep.subr.bf16.mxu0 %v539
    %700 = vmatpush1.bf16.msra.mxu0 %v538
    %701 = vmatprep.subr.bf16.mxu0 0
    %702 = vmatpush1.bf16.msra.mxu0 0
    %703 = vmatprep.subr.bf16.mxu0 0
    %704 = vmatpush1.bf16.msra.mxu0 0
    %705 = vmatprep.subr.bf16.mxu0 0
    %706 = vmatpush1.bf16.msra.mxu0 0
    %707 = vmatprep.subr.bf16.mxu0 0
    %708 = vmatpush1.bf16.msra.mxu0 0
    %709 = vmatprep.subr.bf16.mxu0 0
    %710 = vmatpush1.bf16.msra.mxu0 0
    %711 = vmatprep.subr.bf16.mxu0 0
    %712 = vmatpush1.bf16.msra.mxu0 0
    %713 = vmatprep.subr.bf16.mxu0 0
    %714 = vmatpush1.bf16.msra.mxu0 0
    %715 = vmatprep.subr.bf16.mxu0 0
    %716 = vmatpush1.bf16.msra.mxu0 0
    %717 = vmatprep.mubr.bf16.mxu0 0
    %718 = vmatmul.mubr.bf16.gmra.mrb[0].mxu0 %v684
    %v719 = vpop.f32.mrb[0].mxu0
    %v720 = vadd.f32 0.0, %v719
    %v721 = vpop.f32.mrb[0].mxu0
    %v722 = vadd.f32 0.0, %v721
    %v723 = vpop.f32.mrb[0].mxu0
    %v724 = vpop.f32.mrb[0].mxu0
    %725 = vdwg.mxu0
    %726 = vmatprep.subr.bf16.mxu0 %v513
    %727 = vmatpush1.bf16.msra.mxu0 %v512
    %728 = vmatprep.subr.bf16.mxu0 %v517
    %729 = vmatpush1.bf16.msra.mxu0 %v516
    %730 = vmatprep.subr.bf16.mxu0 %v521
    %731 = vmatpush1.bf16.msra.mxu0 %v520
    %732 = vmatprep.subr.bf16.mxu0 %v525
    %733 = vmatpush1.bf16.msra.mxu0 %v524
    %734 = vmatprep.subr.bf16.mxu0 %v529
    %735 = vmatpush1.bf16.msra.mxu0 %v528
    %736 = vmatprep.subr.bf16.mxu0 %v533
    %737 = vmatpush1.bf16.msra.mxu0 %v532
    %738 = vmatprep.subr.bf16.mxu0 %v537
    %739 = vmatpush1.bf16.msra.mxu0 %v536
    %740 = vmatprep.subr.bf16.mxu0 %v541
    %741 = vmatpush1.bf16.msra.mxu0 %v540
    %742 = vmatprep.subr.bf16.mxu0 0
    %743 = vmatpush1.bf16.msra.mxu0 0
    %744 = vmatprep.subr.bf16.mxu0 0
    %745 = vmatpush1.bf16.msra.mxu0 0
    %746 = vmatprep.subr.bf16.mxu0 0
    %747 = vmatpush1.bf16.msra.mxu0 0
    %748 = vmatprep.subr.bf16.mxu0 0
    %749 = vmatpush1.bf16.msra.mxu0 0
    %750 = vmatprep.subr.bf16.mxu0 0
    %751 = vmatpush1.bf16.msra.mxu0 0
    %752 = vmatprep.subr.bf16.mxu0 0
    %753 = vmatpush1.bf16.msra.mxu0 0
    %754 = vmatprep.subr.bf16.mxu0 0
    %755 = vmatpush1.bf16.msra.mxu0 0
    %756 = vmatprep.subr.bf16.mxu0 0
    %757 = vmatpush1.bf16.msra.mxu0 0
    %758 = vmatprep.mubr.bf16.mxu0 0
    %759 = vmatmul.mubr.bf16.gmra.mrb[0].mxu0 %v684
    %v760 = vpop.f32.mrb[0].mxu0
    %v761 = vadd.f32 0.0, %v760
    %v762 = vpop.f32.mrb[0].mxu0
    %v763 = vadd.f32 0.0, %v762
    %v764 = vpop.f32.mrb[0].mxu0
    %v765 = vpop.f32.mrb[0].mxu0
    %766 = vdwg.mxu0
    %v767 = vadd.f32 %v680, %v720
    %v768 = vadd.f32 %v681, %v722
    %v769 = vadd.f32 %v682, %v761
    %v770 = vadd.f32 %v683, %v763
    %v771 = vmul.f32 %v767, 0.5
    %v772 = vtanh.pop %v771
    %v773 = vmul.f32 %v772, 0.5
    %v774 = vadd.f32 %v773, 0.5
    %v775 = vmul.f32 %v768, 0.5
    %v776 = vtanh.pop %v775
    %v777 = vmul.f32 %v776, 0.5
    %v778 = vadd.f32 %v777, 0.5
    %v779 = vtanh.pop %v769
    %v780 = vmul.f32 %v770, 0.5
    %v781 = vtanh.pop %v780
    %v782 = vmul.f32 %v781, 0.5
    %v783 = vadd.f32 %v782, 0.5
    %v784 = vmul.f32 %v778, %v675
    %v785 = vmul.f32 %v774, %v779
    %v786 = vadd.f32 %v784, %v785
    %v787 = vtanh.pop %v786
    %v788 = vmul.f32 %v783, %v787
    %s789 = scalar_lea.vmem [#allocation5], 8
    %790 = vst [vmem:[%s789] sm:$0xff] %v788
    %s791 = scalar_lea.vmem [#allocation4], 64
    %v792 = vld [vmem:[%s791] sm:$0xff]
    %v793 = vld [vmem:[%s791 + $0x8] sm:$0xff]
    %v794 = vld [vmem:[%s791 + $0x10] sm:$0xff]
    %v795 = vld [vmem:[%s791 + $0x18] sm:$0xff]
    %v796 = vpack.c.bf16 %v788, %v788
    %797 = vmatprep.subr.bf16.mxu0 %v511
    %798 = vmatpush1.bf16.msra.mxu0 %v510
    %799 = vmatprep.subr.bf16.mxu0 %v515
    %800 = vmatpush1.bf16.msra.mxu0 %v514
    %801 = vmatprep.subr.bf16.mxu0 %v519
    %802 = vmatpush1.bf16.msra.mxu0 %v518
    %803 = vmatprep.subr.bf16.mxu0 %v523
    %804 = vmatpush1.bf16.msra.mxu0 %v522
    %805 = vmatprep.subr.bf16.mxu0 %v527
    %806 = vmatpush1.bf16.msra.mxu0 %v526
    %807 = vmatprep.subr.bf16.mxu0 %v531
    %808 = vmatpush1.bf16.msra.mxu0 %v530
    %809 = vmatprep.subr.bf16.mxu0 %v535
    %810 = vmatpush1.bf16.msra.mxu0 %v534
    %811 = vmatprep.subr.bf16.mxu0 %v539
    %812 = vmatpush1.bf16.msra.mxu0 %v538
    %813 = vmatprep.subr.bf16.mxu0 0
    %814 = vmatpush1.bf16.msra.mxu0 0
    %815 = vmatprep.subr.bf16.mxu0 0
    %816 = vmatpush1.bf16.msra.mxu0 0
    %817 = vmatprep.subr.bf16.mxu0 0
    %818 = vmatpush1.bf16.msra.mxu0 0
    %819 = vmatprep.subr.bf16.mxu0 0
    %820 = vmatpush1.bf16.msra.mxu0 0
    %821 = vmatprep.subr.bf16.mxu0 0
    %822 = vmatpush1.bf16.msra.mxu0 0
    %823 = vmatprep.subr.bf16.mxu0 0
    %824 = vmatpush1.bf16.msra.mxu0 0
    %825 = vmatprep.subr.bf16.mxu0 0
    %826 = vmatpush1.bf16.msra.mxu0 0
    %827 = vmatprep.subr.bf16.mxu0 0
    %828 = vmatpush1.bf16.msra.mxu0 0
    %829 = vmatprep.mubr.bf16.mxu0 0
    %830 = vmatmul.mubr.bf16.gmra.mrb[0].mxu0 %v796
    %v831 = vpop.f32.mrb[0].mxu0
    %v832 = vadd.f32 0.0, %v831
    %v833 = vpop.f32.mrb[0].mxu0
    %v834 = vadd.f32 0.0, %v833
    %v835 = vpop.f32.mrb[0].mxu0
    %v836 = vpop.f32.mrb[0].mxu0
    %837 = vdwg.mxu0
    %838 = vmatprep.subr.bf16.mxu0 %v513
    %839 = vmatpush1.bf16.msra.mxu0 %v512
    %840 = vmatprep.subr.bf16.mxu0 %v517
    %841 = vmatpush1.bf16.msra.mxu0 %v516
    %842 = vmatprep.subr.bf16.mxu0 %v521
    %843 = vmatpush1.bf16.msra.mxu0 %v520
    %844 = vmatprep.subr.bf16.mxu0 %v525
    %845 = vmatpush1.bf16.msra.mxu0 %v524
    %846 = vmatprep.subr.bf16.mxu0 %v529
    %847 = vmatpush1.bf16.msra.mxu0 %v528
    %848 = vmatprep.subr.bf16.mxu0 %v533
    %849 = vmatpush1.bf16.msra.mxu0 %v532
    %850 = vmatprep.subr.bf16.mxu0 %v537
    %851 = vmatpush1.bf16.msra.mxu0 %v536
    %852 = vmatprep.subr.bf16.mxu0 %v541
    %853 = vmatpush1.bf16.msra.mxu0 %v540
    %854 = vmatprep.subr.bf16.mxu0 0
    %855 = vmatpush1.bf16.msra.mxu0 0
    %856 = vmatprep.subr.bf16.mxu0 0
    %857 = vmatpush1.bf16.msra.mxu0 0
    %858 = vmatprep.subr.bf16.mxu0 0
    %859 = vmatpush1.bf16.msra.mxu0 0
    %860 = vmatprep.subr.bf16.mxu0 0
    %861 = vmatpush1.bf16.msra.mxu0 0
    %862 = vmatprep.subr.bf16.mxu0 0
    %863 = vmatpush1.bf16.msra.mxu0 0
    %864 = vmatprep.subr.bf16.mxu0 0
    %865 = vmatpush1.bf16.msra.mxu0 0
    %866 = vmatprep.subr.bf16.mxu0 0
    %867 = vmatpush1.bf16.msra.mxu0 0
    %868 = vmatprep.subr.bf16.mxu0 0
    %869 = vmatpush1.bf16.msra.mxu0 0
    %870 = vmatprep.mubr.bf16.mxu0 0
    %871 = vmatmul.mubr.bf16.gmra.mrb[0].mxu0 %v796
    %v872 = vpop.f32.mrb[0].mxu0
    %v873 = vadd.f32 0.0, %v872
    %v874 = vpop.f32.mrb[0].mxu0
    %v875 = vadd.f32 0.0, %v874
    %v876 = vpop.f32.mrb[0].mxu0
    %v877 = vpop.f32.mrb[0].mxu0
    %878 = vdwg.mxu0
    %v879 = vadd.f32 %v792, %v832
    %v880 = vadd.f32 %v793, %v834
    %v881 = vadd.f32 %v794, %v873
    %v882 = vadd.f32 %v795, %v875
    %v883 = vmul.f32 %v879, 0.5
    %v884 = vtanh.pop %v883
    %v885 = vmul.f32 %v884, 0.5
    %v886 = vadd.f32 %v885, 0.5
    %v887 = vmul.f32 %v880, 0.5
    %v888 = vtanh.pop %v887
    %v889 = vmul.f32 %v888, 0.5
    %v890 = vadd.f32 %v889, 0.5
    %v891 = vtanh.pop %v881
    %v892 = vmul.f32 %v882, 0.5
    %v893 = vtanh.pop %v892
    %v894 = vmul.f32 %v893, 0.5
    %v895 = vadd.f32 %v894, 0.5
    %v896 = vmul.f32 %v890, %v786
    %v897 = vmul.f32 %v886, %v891
    %v898 = vadd.f32 %v896, %v897
    %v899 = vtanh.pop %v898
    %v900 = vmul.f32 %v895, %v899
    %s901 = scalar_lea.vmem [#allocation5], 16
    %902 = vst [vmem:[%s901] sm:$0xff] %v900
    %s903 = scalar_lea.vmem [#allocation4], 96
    %v904 = vld [vmem:[%s903] sm:$0xff]
    %v905 = vld [vmem:[%s903 + $0x8] sm:$0xff]
    %v906 = vld [vmem:[%s903 + $0x10] sm:$0xff]
    %v907 = vld [vmem:[%s903 + $0x18] sm:$0xff]
    %v908 = vpack.c.bf16 %v900, %v900
    %909 = vmatprep.subr.bf16.mxu0 %v511
    %910 = vmatpush1.bf16.msra.mxu0 %v510
    %911 = vmatprep.subr.bf16.mxu0 %v515
    %912 = vmatpush1.bf16.msra.mxu0 %v514
    %913 = vmatprep.subr.bf16.mxu0 %v519
    %914 = vmatpush1.bf16.msra.mxu0 %v518
    %915 = vmatprep.subr.bf16.mxu0 %v523
    %916 = vmatpush1.bf16.msra.mxu0 %v522
    %917 = vmatprep.subr.bf16.mxu0 %v527
    %918 = vmatpush1.bf16.msra.mxu0 %v526
    %919 = vmatprep.subr.bf16.mxu0 %v531
    %920 = vmatpush1.bf16.msra.mxu0 %v530
    %921 = vmatprep.subr.bf16.mxu0 %v535
    %922 = vmatpush1.bf16.msra.mxu0 %v534
    %923 = vmatprep.subr.bf16.mxu0 %v539
    %924 = vmatpush1.bf16.msra.mxu0 %v538
    %925 = vmatprep.subr.bf16.mxu0 0
    %926 = vmatpush1.bf16.msra.mxu0 0
    %927 = vmatprep.subr.bf16.mxu0 0
    %928 = vmatpush1.bf16.msra.mxu0 0
    %929 = vmatprep.subr.bf16.mxu0 0
    %930 = vmatpush1.bf16.msra.mxu0 0
    %931 = vmatprep.subr.bf16.mxu0 0
    %932 = vmatpush1.bf16.msra.mxu0 0
    %933 = vmatprep.subr.bf16.mxu0 0
    %934 = vmatpush1.bf16.msra.mxu0 0
    %935 = vmatprep.subr.bf16.mxu0 0
    %936 = vmatpush1.bf16.msra.mxu0 0
    %937 = vmatprep.subr.bf16.mxu0 0
    %938 = vmatpush1.bf16.msra.mxu0 0
    %939 = vmatprep.subr.bf16.mxu0 0
    %940 = vmatpush1.bf16.msra.mxu0 0
    %941 = vmatprep.mubr.bf16.mxu0 0
    %942 = vmatmul.mubr.bf16.gmra.mrb[0].mxu0 %v908
    %v943 = vpop.f32.mrb[0].mxu0
    %v944 = vadd.f32 0.0, %v943
    %v945 = vpop.f32.mrb[0].mxu0
    %v946 = vadd.f32 0.0, %v945
    %v947 = vpop.f32.mrb[0].mxu0
    %v948 = vpop.f32.mrb[0].mxu0
    %949 = vdwg.mxu0
    %950 = vmatprep.subr.bf16.mxu0 %v513
    %951 = vmatpush1.bf16.msra.mxu0 %v512
    %952 = vmatprep.subr.bf16.mxu0 %v517
    %953 = vmatpush1.bf16.msra.mxu0 %v516
    %954 = vmatprep.subr.bf16.mxu0 %v521
    %955 = vmatpush1.bf16.msra.mxu0 %v520
    %956 = vmatprep.subr.bf16.mxu0 %v525
    %957 = vmatpush1.bf16.msra.mxu0 %v524
    %958 = vmatprep.subr.bf16.mxu0 %v529
    %959 = vmatpush1.bf16.msra.mxu0 %v528
    %960 = vmatprep.subr.bf16.mxu0 %v533
    %961 = vmatpush1.bf16.msra.mxu0 %v532
    %962 = vmatprep.subr.bf16.mxu0 %v537
    %963 = vmatpush1.bf16.msra.mxu0 %v536
    %964 = vmatprep.subr.bf16.mxu0 %v541
    %965 = vmatpush1.bf16.msra.mxu0 %v540
    %966 = vmatprep.subr.bf16.mxu0 0
    %967 = vmatpush1.bf16.msra.mxu0 0
    %968 = vmatprep.subr.bf16.mxu0 0
    %969 = vmatpush1.bf16.msra.mxu0 0
    %970 = vmatprep.subr.bf16.mxu0 0
    %971 = vmatpush1.bf16.msra.mxu0 0
    %972 = vmatprep.subr.bf16.mxu0 0
    %973 = vmatpush1.bf16.msra.mxu0 0
    %974 = vmatprep.subr.bf16.mxu0 0
    %975 = vmatpush1.bf16.msra.mxu0 0
    %976 = vmatprep.subr.bf16.mxu0 0
    %977 = vmatpush1.bf16.msra.mxu0 0
    %978 = vmatprep.subr.bf16.mxu0 0
    %979 = vmatpush1.bf16.msra.mxu0 0
    %980 = vmatprep.subr.bf16.mxu0 0
    %981 = vmatpush1.bf16.msra.mxu0 0
    %982 = vmatprep.mubr.bf16.mxu0 0
    %983 = vmatmul.mubr.bf16.gmra.mrb[0].mxu0 %v908
    %v984 = vpop.f32.mrb[0].mxu0
    %v985 = vadd.f32 0.0, %v984
    %v986 = vpop.f32.mrb[0].mxu0
    %v987 = vadd.f32 0.0, %v986
    %v988 = vpop.f32.mrb[0].mxu0
    %v989 = vpop.f32.mrb[0].mxu0
    %990 = vdwg.mxu0
    %v991 = vadd.f32 %v904, %v944
    %v992 = vadd.f32 %v905, %v946
    %v993 = vadd.f32 %v906, %v985
    %v994 = vadd.f32 %v907, %v987
    %v995 = vmul.f32 %v991, 0.5
    %v996 = vtanh.pop %v995
    %v997 = vmul.f32 %v996, 0.5
    %v998 = vadd.f32 %v997, 0.5
    %v999 = vmul.f32 %v992, 0.5
    %v1000 = vtanh.pop %v999
    %v1001 = vmul.f32 %v1000, 0.5
    %v1002 = vadd.f32 %v1001, 0.5
    %v1003 = vtanh.pop %v993
    %v1004 = vmul.f32 %v994, 0.5
    %v1005 = vtanh.pop %v1004
    %v1006 = vmul.f32 %v1005, 0.5
    %v1007 = vadd.f32 %v1006, 0.5
    %v1008 = vmul.f32 %v1002, %v898
    %v1009 = vmul.f32 %v998, %v1003
    %v1010 = vadd.f32 %v1008, %v1009
    %v1011 = vtanh.pop %v1010
    %v1012 = vmul.f32 %v1007, %v1011
    %s1013 = scalar_lea.vmem [#allocation5], 24
    %1014 = vst [vmem:[%s1013] sm:$0xff] %v1012
    %s1015 = scalar_lea.vmem [#allocation4], 128
    %v1016 = vld [vmem:[%s1015] sm:$0xff]
    %v1017 = vld [vmem:[%s1015 + $0x8] sm:$0xff]
    %v1018 = vld [vmem:[%s1015 + $0x10] sm:$0xff]
    %v1019 = vld [vmem:[%s1015 + $0x18] sm:$0xff]
    %v1020 = vpack.c.bf16 %v1012, %v1012
    %1021 = vmatprep.subr.bf16.mxu0 %v511
    %1022 = vmatpush1.bf16.msra.mxu0 %v510
    %1023 = vmatprep.subr.bf16.mxu0 %v515
    %1024 = vmatpush1.bf16.msra.mxu0 %v514
    %1025 = vmatprep.subr.bf16.mxu0 %v519
    %1026 = vmatpush1.bf16.msra.mxu0 %v518
    %1027 = vmatprep.subr.bf16.mxu0 %v523
    %1028 = vmatpush1.bf16.msra.mxu0 %v522
    %1029 = vmatprep.subr.bf16.mxu0 %v527
    %1030 = vmatpush1.bf16.msra.mxu0 %v526
    %1031 = vmatprep.subr.bf16.mxu0 %v531
    %1032 = vmatpush1.bf16.msra.mxu0 %v530
    %1033 = vmatprep.subr.bf16.mxu0 %v535
    %1034 = vmatpush1.bf16.msra.mxu0 %v534
    %1035 = vmatprep.subr.bf16.mxu0 %v539
    %1036 = vmatpush1.bf16.msra.mxu0 %v538
    %1037 = vmatprep.subr.bf16.mxu0 0
    %1038 = vmatpush1.bf16.msra.mxu0 0
    %1039 = vmatprep.subr.bf16.mxu0 0
    %1040 = vmatpush1.bf16.msra.mxu0 0
    %1041 = vmatprep.subr.bf16.mxu0 0
    %1042 = vmatpush1.bf16.msra.mxu0 0
    %1043 = vmatprep.subr.bf16.mxu0 0
    %1044 = vmatpush1.bf16.msra.mxu0 0
    %1045 = vmatprep.subr.bf16.mxu0 0
    %1046 = vmatpush1.bf16.msra.mxu0 0
    %1047 = vmatprep.subr.bf16.mxu0 0
    %1048 = vmatpush1.bf16.msra.mxu0 0
    %1049 = vmatprep.subr.bf16.mxu0 0
    %1050 = vmatpush1.bf16.msra.mxu0 0
    %1051 = vmatprep.subr.bf16.mxu0 0
    %1052 = vmatpush1.bf16.msra.mxu0 0
    %1053 = vmatprep.mubr.bf16.mxu0 0
    %1054 = vmatmul.mubr.bf16.gmra.mrb[0].mxu0 %v1020
    %v1055 = vpop.f32.mrb[0].mxu0
    %v1056 = vadd.f32 0.0, %v1055
    %v1057 = vpop.f32.mrb[0].mxu0
    %v1058 = vadd.f32 0.0, %v1057
    %v1059 = vpop.f32.mrb[0].mxu0
    %v1060 = vpop.f32.mrb[0].mxu0
    %1061 = vdwg.mxu0
    %1062 = vmatprep.subr.bf16.mxu0 %v513
    %1063 = vmatpush1.bf16.msra.mxu0 %v512
    %1064 = vmatprep.subr.bf16.mxu0 %v517
    %1065 = vmatpush1.bf16.msra.mxu0 %v516
    %1066 = vmatprep.subr.bf16.mxu0 %v521
    %1067 = vmatpush1.bf16.msra.mxu0 %v520
    %1068 = vmatprep.subr.bf16.mxu0 %v525
    %1069 = vmatpush1.bf16.msra.mxu0 %v524
    %1070 = vmatprep.subr.bf16.mxu0 %v529
    %1071 = vmatpush1.bf16.msra.mxu0 %v528
    %1072 = vmatprep.subr.bf16.mxu0 %v533
    %1073 = vmatpush1.bf16.msra.mxu0 %v532
    %1074 = vmatprep.subr.bf16.mxu0 %v537
    %1075 = vmatpush1.bf16.msra.mxu0 %v536
    %1076 = vmatprep.subr.bf16.mxu0 %v541
    %1077 = vmatpush1.bf16.msra.mxu0 %v540
    %1078 = vmatprep.subr.bf16.mxu0 0
    %1079 = vmatpush1.bf16.msra.mxu0 0
    %1080 = vmatprep.subr.bf16.mxu0 0
    %1081 = vmatpush1.bf16.msra.mxu0 0
    %1082 = vmatprep.subr.bf16.mxu0 0
    %1083 = vmatpush1.bf16.msra.mxu0 0
    %1084 = vmatprep.subr.bf16.mxu0 0
    %1085 = vmatpush1.bf16.msra.mxu0 0
    %1086 = vmatprep.subr.bf16.mxu0 0
    %1087 = vmatpush1.bf16.msra.mxu0 0
    %1088 = vmatprep.subr.bf16.mxu0 0
    %1089 = vmatpush1.bf16.msra.mxu0 0
    %1090 = vmatprep.subr.bf16.mxu0 0
    %1091 = vmatpush1.bf16.msra.mxu0 0
    %1092 = vmatprep.subr.bf16.mxu0 0
    %1093 = vmatpush1.bf16.msra.mxu0 0
    %1094 = vmatprep.mubr.bf16.mxu0 0
    %1095 = vmatmul.mubr.bf16.gmra.mrb[0].mxu0 %v1020
    %v1096 = vpop.f32.mrb[0].mxu0
    %v1097 = vadd.f32 0.0, %v1096
    %v1098 = vpop.f32.mrb[0].mxu0
    %v1099 = vadd.f32 0.0, %v1098
    %v1100 = vpop.f32.mrb[0].mxu0
    %v1101 = vpop.f32.mrb[0].mxu0
    %1102 = vdwg.mxu0
    %v1103 = vadd.f32 %v1016, %v1056
    %v1104 = vadd.f32 %v1017, %v1058
    %v1105 = vadd.f32 %v1018, %v1097
    %v1106 = vadd.f32 %v1019, %v1099
    %v1107 = vmul.f32 %v1103, 0.5
    %v1108 = vtanh.pop %v1107
    %v1109 = vmul.f32 %v1108, 0.5
    %v1110 = vadd.f32 %v1109, 0.5
    %v1111 = vmul.f32 %v1104, 0.5
    %v1112 = vtanh.pop %v1111
    %v1113 = vmul.f32 %v1112, 0.5
    %v1114 = vadd.f32 %v1113, 0.5
    %v1115 = vtanh.pop %v1105
    %v1116 = vmul.f32 %v1106, 0.5
    %v1117 = vtanh.pop %v1116
    %v1118 = vmul.f32 %v1117, 0.5
    %v1119 = vadd.f32 %v1118, 0.5
    %v1120 = vmul.f32 %v1114, %v1010
    %v1121 = vmul.f32 %v1110, %v1115
    %v1122 = vadd.f32 %v1120, %v1121
    %v1123 = vtanh.pop %v1122
    %v1124 = vmul.f32 %v1119, %v1123
    %s1125 = scalar_lea.vmem [#allocation5], 32
    %1126 = vst [vmem:[%s1125] sm:$0xff] %v1124
    %s1127 = scalar_lea.vmem [#allocation4], 160
    %v1128 = vld [vmem:[%s1127] sm:$0xff]
    %v1129 = vld [vmem:[%s1127 + $0x8] sm:$0xff]
    %v1130 = vld [vmem:[%s1127 + $0x10] sm:$0xff]
    %v1131 = vld [vmem:[%s1127 + $0x18] sm:$0xff]
    %v1132 = vpack.c.bf16 %v1124, %v1124
    %1133 = vmatprep.subr.bf16.mxu0 %v511
    %1134 = vmatpush1.bf16.msra.mxu0 %v510
    %1135 = vmatprep.subr.bf16.mxu0 %v515
    %1136 = vmatpush1.bf16.msra.mxu0 %v514
    %1137 = vmatprep.subr.bf16.mxu0 %v519
    %1138 = vmatpush1.bf16.msra.mxu0 %v518
    %1139 = vmatprep.subr.bf16.mxu0 %v523
    %1140 = vmatpush1.bf16.msra.mxu0 %v522
    %1141 = vmatprep.subr.bf16.mxu0 %v527
    %1142 = vmatpush1.bf16.msra.mxu0 %v526
    %1143 = vmatprep.subr.bf16.mxu0 %v531
    %1144 = vmatpush1.bf16.msra.mxu0 %v530
    %1145 = vmatprep.subr.bf16.mxu0 %v535
    %1146 = vmatpush1.bf16.msra.mxu0 %v534
    %1147 = vmatprep.subr.bf16.mxu0 %v539
    %1148 = vmatpush1.bf16.msra.mxu0 %v538
    %1149 = vmatprep.subr.bf16.mxu0 0
    %1150 = vmatpush1.bf16.msra.mxu0 0
    %1151 = vmatprep.subr.bf16.mxu0 0
    %1152 = vmatpush1.bf16.msra.mxu0 0
    %1153 = vmatprep.subr.bf16.mxu0 0
    %1154 = vmatpush1.bf16.msra.mxu0 0
    %1155 = vmatprep.subr.bf16.mxu0 0
    %1156 = vmatpush1.bf16.msra.mxu0 0
    %1157 = vmatprep.subr.bf16.mxu0 0
    %1158 = vmatpush1.bf16.msra.mxu0 0
    %1159 = vmatprep.subr.bf16.mxu0 0
    %1160 = vmatpush1.bf16.msra.mxu0 0
    %1161 = vmatprep.subr.bf16.mxu0 0
    %1162 = vmatpush1.bf16.msra.mxu0 0
    %1163 = vmatprep.subr.bf16.mxu0 0
    %1164 = vmatpush1.bf16.msra.mxu0 0
    %1165 = vmatprep.mubr.bf16.mxu0 0
    %1166 = vmatmul.mubr.bf16.gmra.mrb[0].mxu0 %v1132
    %v1167 = vpop.f32.mrb[0].mxu0
    %v1168 = vadd.f32 0.0, %v1167
    %v1169 = vpop.f32.mrb[0].mxu0
    %v1170 = vadd.f32 0.0, %v1169
    %v1171 = vpop.f32.mrb[0].mxu0
    %v1172 = vpop.f32.mrb[0].mxu0
    %1173 = vdwg.mxu0
    %1174 = vmatprep.subr.bf16.mxu0 %v513
    %1175 = vmatpush1.bf16.msra.mxu0 %v512
    %1176 = vmatprep.subr.bf16.mxu0 %v517
    %1177 = vmatpush1.bf16.msra.mxu0 %v516
    %1178 = vmatprep.subr.bf16.mxu0 %v521
    %1179 = vmatpush1.bf16.msra.mxu0 %v520
    %1180 = vmatprep.subr.bf16.mxu0 %v525
    %1181 = vmatpush1.bf16.msra.mxu0 %v524
    %1182 = vmatprep.subr.bf16.mxu0 %v529
    %1183 = vmatpush1.bf16.msra.mxu0 %v528
    %1184 = vmatprep.subr.bf16.mxu0 %v533
    %1185 = vmatpush1.bf16.msra.mxu0 %v532
    %1186 = vmatprep.subr.bf16.mxu0 %v537
    %1187 = vmatpush1.bf16.msra.mxu0 %v536
    %1188 = vmatprep.subr.bf16.mxu0 %v541
    %1189 = vmatpush1.bf16.msra.mxu0 %v540
    %1190 = vmatprep.subr.bf16.mxu0 0
    %1191 = vmatpush1.bf16.msra.mxu0 0
    %1192 = vmatprep.subr.bf16.mxu0 0
    %1193 = vmatpush1.bf16.msra.mxu0 0
    %1194 = vmatprep.subr.bf16.mxu0 0
    %1195 = vmatpush1.bf16.msra.mxu0 0
    %1196 = vmatprep.subr.bf16.mxu0 0
    %1197 = vmatpush1.bf16.msra.mxu0 0
    %1198 = vmatprep.subr.bf16.mxu0 0
    %1199 = vmatpush1.bf16.msra.mxu0 0
    %1200 = vmatprep.subr.bf16.mxu0 0
    %1201 = vmatpush1.bf16.msra.mxu0 0
    %1202 = vmatprep.subr.bf16.mxu0 0
    %1203 = vmatpush1.bf16.msra.mxu0 0
    %1204 = vmatprep.subr.bf16.mxu0 0
    %1205 = vmatpush1.bf16.msra.mxu0 0
    %1206 = vmatprep.mubr.bf16.mxu0 0
    %1207 = vmatmul.mubr.bf16.gmra.mrb[0].mxu0 %v1132
    %v1208 = vpop.f32.mrb[0].mxu0
    %v1209 = vadd.f32 0.0, %v1208
    %v1210 = vpop.f32.mrb[0].mxu0
    %v1211 = vadd.f32 0.0, %v1210
    %v1212 = vpop.f32.mrb[0].mxu0
    %v1213 = vpop.f32.mrb[0].mxu0
    %1214 = vdwg.mxu0
    %v1215 = vadd.f32 %v1128, %v1168
    %v1216 = vadd.f32 %v1129, %v1170
    %v1217 = vadd.f32 %v1130, %v1209
    %v1218 = vadd.f32 %v1131, %v1211
    %v1219 = vmul.f32 %v1215, 0.5
    %v1220 = vtanh.pop %v1219
    %v1221 = vmul.f32 %v1220, 0.5
    %v1222 = vadd.f32 %v1221, 0.5
    %v1223 = vmul.f32 %v1216, 0.5
    %v1224 = vtanh.pop %v1223
    %v1225 = vmul.f32 %v1224, 0.5
    %v1226 = vadd.f32 %v1225, 0.5
    %v1227 = vtanh.pop %v1217
    %v1228 = vmul.f32 %v1218, 0.5
    %v1229 = vtanh.pop %v1228
    %v1230 = vmul.f32 %v1229, 0.5
    %v1231 = vadd.f32 %v1230, 0.5
    %v1232 = vmul.f32 %v1226, %v1122
    %v1233 = vmul.f32 %v1222, %v1227
    %v1234 = vadd.f32 %v1232, %v1233
    %v1235 = vtanh.pop %v1234
    %v1236 = vmul.f32 %v1231, %v1235
    %s1237 = scalar_lea.vmem [#allocation5], 40
    %1238 = vst [vmem:[%s1237] sm:$0xff] %v1236
    %s1239 = scalar_lea.vmem [#allocation4], 192
    %v1240 = vld [vmem:[%s1239] sm:$0xff]
    %v1241 = vld [vmem:[%s1239 + $0x8] sm:$0xff]
    %v1242 = vld [vmem:[%s1239 + $0x10] sm:$0xff]
    %v1243 = vld [vmem:[%s1239 + $0x18] sm:$0xff]
    %v1244 = vpack.c.bf16 %v1236, %v1236
    %1245 = vmatprep.subr.bf16.mxu0 %v511
    %1246 = vmatpush1.bf16.msra.mxu0 %v510
    %1247 = vmatprep.subr.bf16.mxu0 %v515
    %1248 = vmatpush1.bf16.msra.mxu0 %v514
    %1249 = vmatprep.subr.bf16.mxu0 %v519
    %1250 = vmatpush1.bf16.msra.mxu0 %v518
    %1251 = vmatprep.subr.bf16.mxu0 %v523
    %1252 = vmatpush1.bf16.msra.mxu0 %v522
    %1253 = vmatprep.subr.bf16.mxu0 %v527
    %1254 = vmatpush1.bf16.msra.mxu0 %v526
    %1255 = vmatprep.subr.bf16.mxu0 %v531
    %1256 = vmatpush1.bf16.msra.mxu0 %v530
    %1257 = vmatprep.subr.bf16.mxu0 %v535
    %1258 = vmatpush1.bf16.msra.mxu0 %v534
    %1259 = vmatprep.subr.bf16.mxu0 %v539
    %1260 = vmatpush1.bf16.msra.mxu0 %v538
    %1261 = vmatprep.subr.bf16.mxu0 0
    %1262 = vmatpush1.bf16.msra.mxu0 0
    %1263 = vmatprep.subr.bf16.mxu0 0
    %1264 = vmatpush1.bf16.msra.mxu0 0
    %1265 = vmatprep.subr.bf16.mxu0 0
    %1266 = vmatpush1.bf16.msra.mxu0 0
    %1267 = vmatprep.subr.bf16.mxu0 0
    %1268 = vmatpush1.bf16.msra.mxu0 0
    %1269 = vmatprep.subr.bf16.mxu0 0
    %1270 = vmatpush1.bf16.msra.mxu0 0
    %1271 = vmatprep.subr.bf16.mxu0 0
    %1272 = vmatpush1.bf16.msra.mxu0 0
    %1273 = vmatprep.subr.bf16.mxu0 0
    %1274 = vmatpush1.bf16.msra.mxu0 0
    %1275 = vmatprep.subr.bf16.mxu0 0
    %1276 = vmatpush1.bf16.msra.mxu0 0
    %1277 = vmatprep.mubr.bf16.mxu0 0
    %1278 = vmatmul.mubr.bf16.gmra.mrb[0].mxu0 %v1244
    %v1279 = vpop.f32.mrb[0].mxu0
    %v1280 = vadd.f32 0.0, %v1279
    %v1281 = vpop.f32.mrb[0].mxu0
    %v1282 = vadd.f32 0.0, %v1281
    %v1283 = vpop.f32.mrb[0].mxu0
    %v1284 = vpop.f32.mrb[0].mxu0
    %1285 = vdwg.mxu0
    %1286 = vmatprep.subr.bf16.mxu0 %v513
    %1287 = vmatpush1.bf16.msra.mxu0 %v512
    %1288 = vmatprep.subr.bf16.mxu0 %v517
    %1289 = vmatpush1.bf16.msra.mxu0 %v516
    %1290 = vmatprep.subr.bf16.mxu0 %v521
    %1291 = vmatpush1.bf16.msra.mxu0 %v520
    %1292 = vmatprep.subr.bf16.mxu0 %v525
    %1293 = vmatpush1.bf16.msra.mxu0 %v524
    %1294 = vmatprep.subr.bf16.mxu0 %v529
    %1295 = vmatpush1.bf16.msra.mxu0 %v528
    %1296 = vmatprep.subr.bf16.mxu0 %v533
    %1297 = vmatpush1.bf16.msra.mxu0 %v532
    %1298 = vmatprep.subr.bf16.mxu0 %v537
    %1299 = vmatpush1.bf16.msra.mxu0 %v536
    %1300 = vmatprep.subr.bf16.mxu0 %v541
    %1301 = vmatpush1.bf16.msra.mxu0 %v540
    %1302 = vmatprep.subr.bf16.mxu0 0
    %1303 = vmatpush1.bf16.msra.mxu0 0
    %1304 = vmatprep.subr.bf16.mxu0 0
    %1305 = vmatpush1.bf16.msra.mxu0 0
    %1306 = vmatprep.subr.bf16.mxu0 0
    %1307 = vmatpush1.bf16.msra.mxu0 0
    %1308 = vmatprep.subr.bf16.mxu0 0
    %1309 = vmatpush1.bf16.msra.mxu0 0
    %1310 = vmatprep.subr.bf16.mxu0 0
    %1311 = vmatpush1.bf16.msra.mxu0 0
    %1312 = vmatprep.subr.bf16.mxu0 0
    %1313 = vmatpush1.bf16.msra.mxu0 0
    %1314 = vmatprep.subr.bf16.mxu0 0
    %1315 = vmatpush1.bf16.msra.mxu0 0
    %1316 = vmatprep.subr.bf16.mxu0 0
    %1317 = vmatpush1.bf16.msra.mxu0 0
    %1318 = vmatprep.mubr.bf16.mxu0 0
    %1319 = vmatmul.mubr.bf16.gmra.mrb[0].mxu0 %v1244
    %v1320 = vpop.f32.mrb[0].mxu0
    %v1321 = vadd.f32 0.0, %v1320
    %v1322 = vpop.f32.mrb[0].mxu0
    %v1323 = vadd.f32 0.0, %v1322
    %v1324 = vpop.f32.mrb[0].mxu0
    %v1325 = vpop.f32.mrb[0].mxu0
    %1326 = vdwg.mxu0
    %v1327 = vadd.f32 %v1240, %v1280
    %v1328 = vadd.f32 %v1241, %v1282
    %v1329 = vadd.f32 %v1242, %v1321
    %v1330 = vadd.f32 %v1243, %v1323
    %v1331 = vmul.f32 %v1327, 0.5
    %v1332 = vtanh.pop %v1331
    %v1333 = vmul.f32 %v1332, 0.5
    %v1334 = vadd.f32 %v1333, 0.5
    %v1335 = vmul.f32 %v1328, 0.5
    %v1336 = vtanh.pop %v1335
    %v1337 = vmul.f32 %v1336, 0.5
    %v1338 = vadd.f32 %v1337, 0.5
    %v1339 = vtanh.pop %v1329
    %v1340 = vmul.f32 %v1330, 0.5
    %v1341 = vtanh.pop %v1340
    %v1342 = vmul.f32 %v1341, 0.5
    %v1343 = vadd.f32 %v1342, 0.5
    %v1344 = vmul.f32 %v1338, %v1234
    %v1345 = vmul.f32 %v1334, %v1339
    %v1346 = vadd.f32 %v1344, %v1345
    %v1347 = vtanh.pop %v1346
    %v1348 = vmul.f32 %v1343, %v1347
    %s1349 = scalar_lea.vmem [#allocation5], 48
    %1350 = vst [vmem:[%s1349] sm:$0xff] %v1348
    %s1351 = scalar_lea.vmem [#allocation4], 224
    %v1352 = vld [vmem:[%s1351] sm:$0xff]
    %v1353 = vld [vmem:[%s1351 + $0x8] sm:$0xff]
    %v1354 = vld [vmem:[%s1351 + $0x10] sm:$0xff]
    %v1355 = vld [vmem:[%s1351 + $0x18] sm:$0xff]
    %v1356 = vpack.c.bf16 %v1348, %v1348
    %1357 = vmatprep.subr.bf16.mxu0 %v511
    %1358 = vmatpush1.bf16.msra.mxu0 %v510
    %1359 = vmatprep.subr.bf16.mxu0 %v515
    %1360 = vmatpush1.bf16.msra.mxu0 %v514
    %1361 = vmatprep.subr.bf16.mxu0 %v519
    %1362 = vmatpush1.bf16.msra.mxu0 %v518
    %1363 = vmatprep.subr.bf16.mxu0 %v523
    %1364 = vmatpush1.bf16.msra.mxu0 %v522
    %1365 = vmatprep.subr.bf16.mxu0 %v527
    %1366 = vmatpush1.bf16.msra.mxu0 %v526
    %1367 = vmatprep.subr.bf16.mxu0 %v531
    %1368 = vmatpush1.bf16.msra.mxu0 %v530
    %1369 = vmatprep.subr.bf16.mxu0 %v535
    %1370 = vmatpush1.bf16.msra.mxu0 %v534
    %1371 = vmatprep.subr.bf16.mxu0 %v539
    %1372 = vmatpush1.bf16.msra.mxu0 %v538
    %1373 = vmatprep.subr.bf16.mxu0 0
    %1374 = vmatpush1.bf16.msra.mxu0 0
    %1375 = vmatprep.subr.bf16.mxu0 0
    %1376 = vmatpush1.bf16.msra.mxu0 0
    %1377 = vmatprep.subr.bf16.mxu0 0
    %1378 = vmatpush1.bf16.msra.mxu0 0
    %1379 = vmatprep.subr.bf16.mxu0 0
    %1380 = vmatpush1.bf16.msra.mxu0 0
    %1381 = vmatprep.subr.bf16.mxu0 0
    %1382 = vmatpush1.bf16.msra.mxu0 0
    %1383 = vmatprep.subr.bf16.mxu0 0
    %1384 = vmatpush1.bf16.msra.mxu0 0
    %1385 = vmatprep.subr.bf16.mxu0 0
    %1386 = vmatpush1.bf16.msra.mxu0 0
    %1387 = vmatprep.subr.bf16.mxu0 0
    %1388 = vmatpush1.bf16.msra.mxu0 0
    %1389 = vmatprep.mubr.bf16.mxu0 0
    %1390 = vmatmul.mubr.bf16.gmra.mrb[0].mxu0 %v1356
    %v1391 = vpop.f32.mrb[0].mxu0
    %v1392 = vadd.f32 0.0, %v1391
    %v1393 = vpop.f32.mrb[0].mxu0
    %v1394 = vadd.f32 0.0, %v1393
    %v1395 = vpop.f32.mrb[0].mxu0
    %v1396 = vpop.f32.mrb[0].mxu0
    %1397 = vdwg.mxu0
    %1398 = vmatprep.subr.bf16.mxu0 %v513
    %1399 = vmatpush1.bf16.msra.mxu0 %v512
    %1400 = vmatprep.subr.bf16.mxu0 %v517
    %1401 = vmatpush1.bf16.msra.mxu0 %v516
    %1402 = vmatprep.subr.bf16.mxu0 %v521
    %1403 = vmatpush1.bf16.msra.mxu0 %v520
    %1404 = vmatprep.subr.bf16.mxu0 %v525
    %1405 = vmatpush1.bf16.msra.mxu0 %v524
    %1406 = vmatprep.subr.bf16.mxu0 %v529
    %1407 = vmatpush1.bf16.msra.mxu0 %v528
    %1408 = vmatprep.subr.bf16.mxu0 %v533
    %1409 = vmatpush1.bf16.msra.mxu0 %v532
    %1410 = vmatprep.subr.bf16.mxu0 %v537
    %1411 = vmatpush1.bf16.msra.mxu0 %v536
    %1412 = vmatprep.subr.bf16.mxu0 %v541
    %1413 = vmatpush1.bf16.msra.mxu0 %v540
    %1414 = vmatprep.subr.bf16.mxu0 0
    %1415 = vmatpush1.bf16.msra.mxu0 0
    %1416 = vmatprep.subr.bf16.mxu0 0
    %1417 = vmatpush1.bf16.msra.mxu0 0
    %1418 = vmatprep.subr.bf16.mxu0 0
    %1419 = vmatpush1.bf16.msra.mxu0 0
    %1420 = vmatprep.subr.bf16.mxu0 0
    %1421 = vmatpush1.bf16.msra.mxu0 0
    %1422 = vmatprep.subr.bf16.mxu0 0
    %1423 = vmatpush1.bf16.msra.mxu0 0
    %1424 = vmatprep.subr.bf16.mxu0 0
    %1425 = vmatpush1.bf16.msra.mxu0 0
    %1426 = vmatprep.subr.bf16.mxu0 0
    %1427 = vmatpush1.bf16.msra.mxu0 0
    %1428 = vmatprep.subr.bf16.mxu0 0
    %1429 = vmatpush1.bf16.msra.mxu0 0
    %1430 = vmatprep.mubr.bf16.mxu0 0
    %1431 = vmatmul.mubr.bf16.gmra.mrb[0].mxu0 %v1356
    %v1432 = vpop.f32.mrb[0].mxu0
    %v1433 = vadd.f32 0.0, %v1432
    %v1434 = vpop.f32.mrb[0].mxu0
    %v1435 = vadd.f32 0.0, %v1434
    %v1436 = vpop.f32.mrb[0].mxu0
    %v1437 = vpop.f32.mrb[0].mxu0
    %1438 = vdwg.mxu0
    %v1439 = vadd.f32 %v1352, %v1392
    %v1440 = vadd.f32 %v1353, %v1394
    %v1441 = vadd.f32 %v1354, %v1433
    %v1442 = vadd.f32 %v1355, %v1435
    %v1443 = vmul.f32 %v1439, 0.5
    %v1444 = vtanh.pop %v1443
    %v1445 = vmul.f32 %v1444, 0.5
    %v1446 = vadd.f32 %v1445, 0.5
    %v1447 = vmul.f32 %v1440, 0.5
    %v1448 = vtanh.pop %v1447
    %v1449 = vmul.f32 %v1448, 0.5
    %v1450 = vadd.f32 %v1449, 0.5
    %v1451 = vtanh.pop %v1441
    %v1452 = vmul.f32 %v1442, 0.5
    %v1453 = vtanh.pop %v1452
    %v1454 = vmul.f32 %v1453, 0.5
    %v1455 = vadd.f32 %v1454, 0.5
    %v1456 = vmul.f32 %v1450, %v1346
    %v1457 = vmul.f32 %v1446, %v1451
    %v1458 = vadd.f32 %v1456, %v1457
    %v1459 = vtanh.pop %v1458
    %v1460 = vmul.f32 %v1455, %v1459
    %s1461 = scalar_lea.vmem [#allocation5], 56
    %1462 = vst [vmem:[%s1461] sm:$0xff] %v1460
    %1463 = vst [vmem:[#allocation2] sm:$0xff] %v1460
    %1464 = vst [vmem:[#allocation3] sm:$0xff] %v1458
    %v1465 = vld [vmem:[#allocation5] sm:$0xff]
    %v1466 = vld [vmem:[#allocation5 + $0x8] sm:$0xff]
    %v1467 = vld [vmem:[#allocation5 + $0x10] sm:$0xff]
    %v1468 = vld [vmem:[#allocation5 + $0x18] sm:$0xff]
    %v1469 = vld [vmem:[#allocation5 + $0x20] sm:$0xff]
    %v1470 = vld [vmem:[#allocation5 + $0x28] sm:$0xff]
    %v1471 = vld [vmem:[#allocation5 + $0x30] sm:$0xff]
    %v1472 = vld [vmem:[#allocation5 + $0x38] sm:$0xff]
    %v1473 = vpack.c.bf16 %v1466, %v1465
    %v1474 = vpack.c.bf16 %v1468, %v1467
    %v1475 = vpack.c.bf16 %v1470, %v1469
    %v1476 = vpack.c.bf16 %v1472, %v1471
    %v1477 = vld [vmem:[#allocation12] sm:$0xf]
    %v1478 = vld [vmem:[#allocation12 + $0x4] sm:$0xf]
    %v1479 = vld [vmem:[#allocation12 + $0x8] sm:$0xf]
    %v1480 = vld [vmem:[#allocation12 + $0xc] sm:$0xf]
    %v1481 = vld [vmem:[#allocation12 + $0x10] sm:$0xf]
    %v1482 = vld [vmem:[#allocation12 + $0x14] sm:$0xf]
    %v1483 = vld [vmem:[#allocation12 + $0x18] sm:$0xf]
    %v1484 = vld [vmem:[#allocation12 + $0x1c] sm:$0xf]
    %v1485 = vld [vmem:[#allocation12 + $0x20] sm:$0xf]
    %v1486 = vld [vmem:[#allocation12 + $0x24] sm:$0xf]
    %v1487 = vld [vmem:[#allocation12 + $0x28] sm:$0xf]
    %v1488 = vld [vmem:[#allocation12 + $0x2c] sm:$0xf]
    %v1489 = vld [vmem:[#allocation12 + $0x30] sm:$0xf]
    %v1490 = vld [vmem:[#allocation12 + $0x34] sm:$0xf]
    %v1491 = vld [vmem:[#allocation12 + $0x38] sm:$0xf]
    %v1492 = vld [vmem:[#allocation12 + $0x3c] sm:$0xf]
    %v1493 = vld [vmem:[%s5] sm:$0x1]
    %v1495 = vlaneseq
    %v1496 = vshrl.u32 %v1495, 7
    %v1497 = vsub.s32 0, %v1496
    %v1498 = vrot.slane %v1493, %v1497
    %v1516 = vunpack.c.l.b16 %v1477
    %v1517 = vunpack.c.l.b16 %v1478
    %v1518 = vunpack.c.l.b16 %v1479
    %v1519 = vunpack.c.l.b16 %v1480
    %v1520 = vunpack.c.l.b16 %v1481
    %v1521 = vunpack.c.l.b16 %v1482
    %v1522 = vunpack.c.l.b16 %v1483
    %v1523 = vunpack.c.l.b16 %v1484
    %v1524 = vunpack.c.l.b16 %v1485
    %v1525 = vunpack.c.l.b16 %v1486
    %v1526 = vunpack.c.l.b16 %v1487
    %v1527 = vunpack.c.l.b16 %v1488
    %v1528 = vunpack.c.l.b16 %v1489
    %v1529 = vunpack.c.l.b16 %v1490
    %v1530 = vunpack.c.l.b16 %v1491
    %v1531 = vunpack.c.l.b16 %v1492
    %v1532 = vpack.c.b16 %v1517, %v1516
    %v1533 = vpack.c.b16 %v1519, %v1518
    %v1534 = vpack.c.b16 %v1521, %v1520
    %v1535 = vpack.c.b16 %v1523, %v1522
    %v1536 = vpack.c.b16 %v1525, %v1524
    %v1537 = vpack.c.b16 %v1527, %v1526
    %v1538 = vpack.c.b16 %v1529, %v1528
    %v1539 = vpack.c.b16 %v1531, %v1530
    %1548 = vmatprep.subr.bf16.mxu0 0
    %1549 = vmatpush1.bf16.msra.mxu0 %v1532
    %1550 = vmatprep.subr.bf16.mxu0 0
    %1551 = vmatpush1.bf16.msra.mxu0 %v1533
    %1552 = vmatprep.subr.bf16.mxu0 0
    %1553 = vmatpush1.bf16.msra.mxu0 %v1534
    %1554 = vmatprep.subr.bf16.mxu0 0
    %1555 = vmatpush1.bf16.msra.mxu0 %v1535
    %1556 = vmatprep.subr.bf16.mxu0 0
    %1557 = vmatpush1.bf16.msra.mxu0 %v1536
    %1558 = vmatprep.subr.bf16.mxu0 0
    %1559 = vmatpush1.bf16.msra.mxu0 %v1537
    %1560 = vmatprep.subr.bf16.mxu0 0
    %1561 = vmatpush1.bf16.msra.mxu0 %v1538
    %1562 = vmatprep.subr.bf16.mxu0 0
    %1563 = vmatpush1.bf16.msra.mxu0 %v1539
    %1564 = vmatprep.subr.bf16.mxu0 0
    %1565 = vmatpush1.bf16.msra.mxu0 0
    %1566 = vmatprep.subr.bf16.mxu0 0
    %1567 = vmatpush1.bf16.msra.mxu0 0
    %1568 = vmatprep.subr.bf16.mxu0 0
    %1569 = vmatpush1.bf16.msra.mxu0 0
    %1570 = vmatprep.subr.bf16.mxu0 0
    %1571 = vmatpush1.bf16.msra.mxu0 0
    %1572 = vmatprep.subr.bf16.mxu0 0
    %1573 = vmatpush1.bf16.msra.mxu0 0
    %1574 = vmatprep.subr.bf16.mxu0 0
    %1575 = vmatpush1.bf16.msra.mxu0 0
    %1576 = vmatprep.subr.bf16.mxu0 0
    %1577 = vmatpush1.bf16.msra.mxu0 0
    %1578 = vmatprep.subr.bf16.mxu0 0
    %1579 = vmatpush1.bf16.msra.mxu0 0
    %1580 = vmatprep.mubr.bf16.mxu0 0
    %1581 = vmatmul.mubr.bf16.gmra.mrb[0].mxu0 %v1473
    %v1582 = vpop.f32.mrb[0].mxu0
    %v1583 = vadd.f32 %v1498, %v1582
    %v1584 = vpop.f32.mrb[0].mxu0
    %v1585 = vpop.f32.mrb[0].mxu0
    %v1586 = vadd.f32 %v1498, %v1585
    %v1587 = vpop.f32.mrb[0].mxu0
    %1588 = vmatprep.mubr.bf16.mxu0 0
    %1589 = vmatmul.mubr.bf16.gmra.mrb[0].mxu0 %v1474
    %v1590 = vpop.f32.mrb[0].mxu0
    %v1591 = vadd.f32 %v1498, %v1590
    %v1592 = vpop.f32.mrb[0].mxu0
    %v1593 = vpop.f32.mrb[0].mxu0
    %v1594 = vadd.f32 %v1498, %v1593
    %v1595 = vpop.f32.mrb[0].mxu0
    %1596 = vmatprep.mubr.bf16.mxu0 0
    %1597 = vmatmul.mubr.bf16.gmra.mrb[0].mxu0 %v1475
    %v1598 = vpop.f32.mrb[0].mxu0
    %v1599 = vadd.f32 %v1498, %v1598
    %v1600 = vpop.f32.mrb[0].mxu0
    %v1601 = vpop.f32.mrb[0].mxu0
    %v1602 = vadd.f32 %v1498, %v1601
    %v1603 = vpop.f32.mrb[0].mxu0
    %1604 = vmatprep.mubr.bf16.mxu0 0
    %1605 = vmatmul.mubr.bf16.gmra.mrb[0].mxu0 %v1476
    %v1606 = vpop.f32.mrb[0].mxu0
    %v1607 = vadd.f32 %v1498, %v1606
    %v1608 = vpop.f32.mrb[0].mxu0
    %v1609 = vpop.f32.mrb[0].mxu0
    %v1610 = vadd.f32 %v1498, %v1609
    %v1611 = vpop.f32.mrb[0].mxu0
    %1612 = vdwg.mxu0
    %1613 = vst [vmem:[#allocation14] sm:$0xff] %v1583
    %1614 = vst [vmem:[#allocation14 + $0x8] sm:$0xff] %v1586
    %1615 = vst [vmem:[#allocation14 + $0x10] sm:$0xff] %v1591
    %1616 = vst [vmem:[#allocation14 + $0x18] sm:$0xff] %v1594
    %1617 = vst [vmem:[#allocation14 + $0x20] sm:$0xff] %v1599
    %1618 = vst [vmem:[#allocation14 + $0x28] sm:$0xff] %v1602
    %1619 = vst [vmem:[#allocation14 + $0x30] sm:$0xff] %v1607
    %1620 = vst [vmem:[#allocation14 + $0x38] sm:$0xff] %v1610
    // Predicated region
    $region46: #{tpu_custom_call.1} parent=1 // pred_check
      _
    $region47: #{tpu_custom_call.1} parent=1 // pred_check_branch
      %1622 = sbr.rel (0) target = $region49
    $region48: #{tpu_custom_call.1} parent=1 // pred_region
      %s1624 = ssub.s32 1024, 1024
      %1625 = vsyncadd [#allocation8], %s1624
      %s1626 = sshll.u32 [#allocation14], 4
      %s1627 = int_to_ptr.vmem [resolvable:$true] %s1626
      %1632 = dma.vmem_to_hbm [thread:$0]  %s1627, 1024, %s6, [#allocation8], 128, 128, 8
    $region49: #{tpu_custom_call.1} parent=1 // pred_fallthru
      _
    // Predicated region
    $region50: #{tpu_custom_call.1} parent=1 // pred_check
      _
    $region51: #{tpu_custom_call.1} parent=1 // pred_check_branch
      %1634 = sbr.rel (0) target = $region53
    $region52: #{tpu_custom_call.1} parent=1 // pred_region
      %1635 = dma.done [#allocation8], 1024
    $region53: #{tpu_custom_call.1} parent=1 // pred_fallthru
      _
    %1636 = vsyncpa [#allocation7], 1
    %1637 = vsyncpa [#allocation10], 1
    %1638 = vsyncpa [#allocation13], 1
    %1639 = vsyncpa [#allocation8], 1

</llo_original>
